<compile_context>
chip_gen: v5e
topology: v5e:2x2
jax: 0.10.0
libtpu: 0.0.40
codegen_flags: <defaults>
</compile_context>

<pallas_src>
import functools

import jax
import jax.numpy as jnp
from jax.experimental import pallas as pl
from jax.experimental.pallas import tpu as pltpu


HIDDEN = 128
IN_DIM = 2
OUT_DIM = 2


def _mlp_kernel(x_ref, w1_ref, b1_ref, w2_ref, b2_ref, w3_ref, b3_ref,
                w4_ref, b4_ref, o_ref):
    x = x_ref[...]  # [tN, 2] f32

    # Layer 1 on the VPU: K=2 contraction as two broadcast FMAs (skips a
    # wasteful padded-K MXU pass).
    h = jnp.tanh(
        x[:, 0:1] * w1_ref[0:1, :]
        + x[:, 1:2] * w1_ref[1:2, :]
        + b1_ref[...]
    )  # [tN, 128] f32

    # Layer 2: bf16 operands, f32 accumulation on the MXU.
    h = jnp.tanh(
        jnp.dot(h.astype(jnp.bfloat16), w2_ref[...],
                preferred_element_type=jnp.float32)
        + b2_ref[...]
    )

    # Layer 3: bf16 operands, f32 accumulation.
    h = jnp.tanh(
        jnp.dot(h.astype(jnp.bfloat16), w3_ref[...],
                preferred_element_type=jnp.float32)
        + b3_ref[...]
    )

    # Layer 4 (no activation): kept in f32 for output precision.
    out = (
        jnp.dot(h, w4_ref[...], preferred_element_type=jnp.float32)
        + b4_ref[...]
    )
    o_ref[...] = out.astype(o_ref.dtype)


@functools.partial(jax.jit, static_argnames=("tile_n",))
def pinn_forward(x, params, *, tile_n=512):
    """Fused forward pass of PINNModel.

    x      : [N, 2] float32
    params : dict with w1 [2,128], b1 [1,128], w2 [128,128], b2 [1,128],
             w3 [128,128], b3 [1,128], w4 [128,2], b4 [1,2] (all f32)
    returns: [N, 2] float32
    """
    n = x.shape[0]
    n_pad = ((n + tile_n - 1) // tile_n) * tile_n
    if n_pad != n:
        x = jnp.pad(x, ((0, n_pad - n), (0, 0)))
    grid = (n_pad // tile_n,)

    # Cast the two 128x128 weight matrices to bf16 once (outside the grid loop).
    w2 = params["w2"].astype(jnp.bfloat16)
    w3 = params["w3"].astype(jnp.bfloat16)

    full = lambda shape: pl.BlockSpec(shape, lambda i: (0, 0))

    out = pl.pallas_call(
        _mlp_kernel,
        out_shape=jax.ShapeDtypeStruct((n_pad, OUT_DIM), jnp.float32),
        grid_spec=pltpu.PrefetchScalarGridSpec(
            num_scalar_prefetch=0,
            grid=grid,
            in_specs=[
                pl.BlockSpec((tile_n, IN_DIM), lambda i: (i, 0)),   # x tile
                full((IN_DIM, HIDDEN)),    # w1 (f32)
                full((1, HIDDEN)),         # b1
                full((HIDDEN, HIDDEN)),    # w2 (bf16)
                full((1, HIDDEN)),         # b2
                full((HIDDEN, HIDDEN)),    # w3 (bf16)
                full((1, HIDDEN)),         # b3
                full((HIDDEN, OUT_DIM)),   # w4 (f32)
                full((1, OUT_DIM)),        # b4
            ],
            out_specs=pl.BlockSpec((tile_n, OUT_DIM), lambda i: (i, 0)),
        ),
        compiler_params=pltpu.CompilerParams(
            dimension_semantics=("parallel",),
            # VMEM use at tile_n=512 is < 2 MiB; only needed if tile_n >= 4096.
            vmem_limit_bytes=(48 * 1024 * 1024 if tile_n >= 4096 else None),
        ),
    )(
        x,
        params["w1"], params["b1"],
        w2, params["b2"],
        w3, params["b3"],
        params["w4"], params["b4"],
    )
    return out[:n]


def init_params(key):
    """Deterministic init matching PyTorch nn.Linear default
    (uniform(-1/sqrt(fan_in), 1/sqrt(fan_in)) for weight and bias).
    Weights stored as [in_features, out_features]."""
    dims = [(IN_DIM, HIDDEN), (HIDDEN, HIDDEN), (HIDDEN, HIDDEN), (HIDDEN, OUT_DIM)]
    params = {}
    for idx, (fan_in, fan_out) in enumerate(dims, start=1):
        key, kw, kb = jax.random.split(key, 3)
        bound = 1.0 / (fan_in ** 0.5)
        params[f"w{idx}"] = jax.random.uniform(
            kw, (fan_in, fan_out), jnp.float32, minval=-bound, maxval=bound)
        params[f"b{idx}"] = jax.random.uniform(
            kb, (1, fan_out), jnp.float32, minval=-bound, maxval=bound)
    return params


def pinn_forward_ref_f32(x, params):
    """Pure-f32 JAX reference (matches the PyTorch module exactly)."""
    h = jnp.tanh(x @ params["w1"] + params["b1"])
    h = jnp.tanh(h @ params["w2"] + params["b2"])
    h = jnp.tanh(h @ params["w3"] + params["b3"])
    return h @ params["w4"] + params["b4"]


def pinn_forward_ref_matched(x, params):
    """Pure-JAX reference with the same bf16 operand casts as the kernel."""
    h = jnp.tanh(x @ params["w1"] + params["b1"])
    h = jnp.tanh(jnp.dot(h.astype(jnp.bfloat16),
                         params["w2"].astype(jnp.bfloat16),
                         preferred_element_type=jnp.float32) + params["b2"])
    h = jnp.tanh(jnp.dot(h.astype(jnp.bfloat16),
                         params["w3"].astype(jnp.bfloat16),
                         preferred_element_type=jnp.float32) + params["b3"])
    return jnp.dot(h, params["w4"],
                   preferred_element_type=jnp.float32) + params["b4"]


if __name__ == "__main__":
    key = jax.random.PRNGKey(0)
    kp, kx = jax.random.split(key)

    params = init_params(kp)
    # Collocation points (x, t); N deliberately not a multiple of tile_n to
    # exercise the padding path.
    n = 1000
    x = jax.random.uniform(kx, (n, IN_DIM), jnp.float32, minval=-1.0, maxval=1.0)

    out = pinn_forward(x, params, tile_n=512)
    out = jax.block_until_ready(out)
    assert out.shape == (n, OUT_DIM)

    # Precision-matched reference (same bf16 casts): tight check.
    ref_matched = pinn_forward_ref_matched(x, params)
    assert jnp.allclose(out, ref_matched, atol=5e-3, rtol=5e-3), \
        "mismatch vs precision-matched reference"

    # Full-f32 reference: informational (bf16 layers introduce ~1e-3 error).
    ref_f32 = pinn_forward_ref_f32(x, params)
    max_diff = float(jnp.max(jnp.abs(out - ref_f32)))
    assert max_diff < 5e-2, f"bf16 drift vs f32 reference too large: {max_diff}"

    print("KERNEL_OK")
</pallas_src>

<mosaic_0001>
module attributes {stable_mosaic.version = 11 : i64} {
  func.func @_mlp_kernel(%arg0: i32, %arg1: memref<512x2xf32, #tpu.memory_space<vmem>>, %arg2: memref<2x128xf32, #tpu.memory_space<vmem>>, %arg3: memref<1x128xf32, #tpu.memory_space<vmem>>, %arg4: memref<128x128xbf16, #tpu.memory_space<vmem>>, %arg5: memref<1x128xf32, #tpu.memory_space<vmem>>, %arg6: memref<128x128xbf16, #tpu.memory_space<vmem>>, %arg7: memref<1x128xf32, #tpu.memory_space<vmem>>, %arg8: memref<128x2xf32, #tpu.memory_space<vmem>>, %arg9: memref<1x2xf32, #tpu.memory_space<vmem>>, %arg10: memref<512x2xf32, #tpu.memory_space<vmem>>) attributes {dimension_semantics = [#tpu.dimension_semantics<parallel>], iteration_bounds = array<i64: 2>, scalar_prefetch = 0 : i64, scratch_operands = 0 : i64, tpu.core_type = #tpu.core_type<tc>, window_params = [{transform_indices = @transform_0, window_bounds = array<i64: 512, 2>}, {pipeline_mode = #tpu.pipeline_mode<synchronous>, transform_indices = @transform_1, window_bounds = array<i64: 2, 128>}, {pipeline_mode = #tpu.pipeline_mode<synchronous>, transform_indices = @transform_2, window_bounds = array<i64: 1, 128>}, {pipeline_mode = #tpu.pipeline_mode<synchronous>, transform_indices = @transform_3, window_bounds = array<i64: 128, 128>}, {pipeline_mode = #tpu.pipeline_mode<synchronous>, transform_indices = @transform_4, window_bounds = array<i64: 1, 128>}, {pipeline_mode = #tpu.pipeline_mode<synchronous>, transform_indices = @transform_5, window_bounds = array<i64: 128, 128>}, {pipeline_mode = #tpu.pipeline_mode<synchronous>, transform_indices = @transform_6, window_bounds = array<i64: 1, 128>}, {pipeline_mode = #tpu.pipeline_mode<synchronous>, transform_indices = @transform_7, window_bounds = array<i64: 128, 2>}, {pipeline_mode = #tpu.pipeline_mode<synchronous>, transform_indices = @transform_8, window_bounds = array<i64: 1, 2>}, {transform_indices = @transform_9, window_bounds = array<i64: 512, 2>}]} {
    %c0 = arith.constant 0 : index
    %c0_0 = arith.constant 0 : index
    %0 = vector.load %arg1[%c0, %c0_0] : memref<512x2xf32, #tpu.memory_space<vmem>>, vector<512x2xf32>
    %1 = vector.extract_strided_slice %0 {offsets = [0, 0], sizes = [512, 1], strides = [1, 1]} : vector<512x2xf32> to vector<512x1xf32>
    %c0_1 = arith.constant 0 : index
    %c0_2 = arith.constant 0 : index
    %2 = vector.load %arg2[%c0_1, %c0_2] : memref<2x128xf32, #tpu.memory_space<vmem>>, vector<1x128xf32>
    %3 = vector.broadcast %1 : vector<512x1xf32> to vector<512x128xf32>
    %4 = vector.broadcast %2 : vector<1x128xf32> to vector<512x128xf32>
    %5 = arith.mulf %3, %4 : vector<512x128xf32>
    %6 = vector.extract_strided_slice %0 {offsets = [0, 1], sizes = [512, 1], strides = [1, 1]} : vector<512x2xf32> to vector<512x1xf32>
    %c1 = arith.constant 1 : index
    %c0_3 = arith.constant 0 : index
    %7 = vector.load %arg2[%c1, %c0_3] : memref<2x128xf32, #tpu.memory_space<vmem>>, vector<1x128xf32>
    %8 = vector.broadcast %6 : vector<512x1xf32> to vector<512x128xf32>
    %9 = vector.broadcast %7 : vector<1x128xf32> to vector<512x128xf32>
    %10 = arith.mulf %8, %9 : vector<512x128xf32>
    %11 = arith.addf %5, %10 : vector<512x128xf32>
    %c0_4 = arith.constant 0 : index
    %c0_5 = arith.constant 0 : index
    %12 = vector.load %arg3[%c0_4, %c0_5] : memref<1x128xf32, #tpu.memory_space<vmem>>, vector<1x128xf32>
    %13 = vector.broadcast %12 : vector<1x128xf32> to vector<512x128xf32>
    %14 = arith.addf %11, %13 : vector<512x128xf32>
    %15 = math.tanh %14 : vector<512x128xf32>
    %16 = arith.truncf %15 : vector<512x128xf32> to vector<512x128xbf16>
    %c0_6 = arith.constant 0 : index
    %c0_7 = arith.constant 0 : index
    %17 = vector.load %arg4[%c0_6, %c0_7] : memref<128x128xbf16, #tpu.memory_space<vmem>>, vector<128x128xbf16>
    %cst = arith.constant dense<0.000000e+00> : vector<512x128xf32>
    %18 = tpu.matmul %16, %17, %cst {dimension_numbers = #tpu.dot_dimension_numbers<[1], [0], [0], [1], [0, 0, 1, 1], [], []>} : vector<512x128xbf16>, vector<128x128xbf16>, vector<512x128xf32> -> vector<512x128xf32>
    %c0_8 = arith.constant 0 : index
    %c0_9 = arith.constant 0 : index
    %19 = vector.load %arg5[%c0_8, %c0_9] : memref<1x128xf32, #tpu.memory_space<vmem>>, vector<1x128xf32>
    %20 = vector.broadcast %19 : vector<1x128xf32> to vector<512x128xf32>
    %21 = arith.addf %18, %20 : vector<512x128xf32>
    %22 = math.tanh %21 : vector<512x128xf32>
    %23 = arith.truncf %22 : vector<512x128xf32> to vector<512x128xbf16>
    %c0_10 = arith.constant 0 : index
    %c0_11 = arith.constant 0 : index
    %24 = vector.load %arg6[%c0_10, %c0_11] : memref<128x128xbf16, #tpu.memory_space<vmem>>, vector<128x128xbf16>
    %cst_12 = arith.constant dense<0.000000e+00> : vector<512x128xf32>
    %25 = tpu.matmul %23, %24, %cst_12 {dimension_numbers = #tpu.dot_dimension_numbers<[1], [0], [0], [1], [0, 0, 1, 1], [], []>} : vector<512x128xbf16>, vector<128x128xbf16>, vector<512x128xf32> -> vector<512x128xf32>
    %c0_13 = arith.constant 0 : index
    %c0_14 = arith.constant 0 : index
    %26 = vector.load %arg7[%c0_13, %c0_14] : memref<1x128xf32, #tpu.memory_space<vmem>>, vector<1x128xf32>
    %27 = vector.broadcast %26 : vector<1x128xf32> to vector<512x128xf32>
    %28 = arith.addf %25, %27 : vector<512x128xf32>
    %29 = math.tanh %28 : vector<512x128xf32>
    %c0_15 = arith.constant 0 : index
    %c0_16 = arith.constant 0 : index
    %30 = vector.load %arg8[%c0_15, %c0_16] : memref<128x2xf32, #tpu.memory_space<vmem>>, vector<128x2xf32>
    %cst_17 = arith.constant dense<0.000000e+00> : vector<512x2xf32>
    %31 = tpu.matmul %29, %30, %cst_17 {dimension_numbers = #tpu.dot_dimension_numbers<[1], [0], [0], [1], [0, 0, 1, 1], [], []>} : vector<512x128xf32>, vector<128x2xf32>, vector<512x2xf32> -> vector<512x2xf32>
    %c0_18 = arith.constant 0 : index
    %c0_19 = arith.constant 0 : index
    %32 = vector.load %arg9[%c0_18, %c0_19] : memref<1x2xf32, #tpu.memory_space<vmem>>, vector<1x2xf32>
    %33 = vector.broadcast %32 : vector<1x2xf32> to vector<512x2xf32>
    %34 = arith.addf %31, %33 : vector<512x2xf32>
    %c0_20 = arith.constant 0 : index
    %c0_21 = arith.constant 0 : index
    %35 = vector.load %arg10[%c0_20, %c0_21] : memref<512x2xf32, #tpu.memory_space<vmem>>, vector<512x2xf32>
    tpu.vector_store %arg10[%c0_20, %c0_21], %34 {strides = array<i32>} : memref<512x2xf32, #tpu.memory_space<vmem>>, vector<512x2xf32>,
    return
  }
  func.func @transform_0(%arg0: i32) -> (i32, i32) {
    %c0_i32 = arith.constant 0 : i32
    %c0_i32_0 = arith.constant 0 : i32
    return %arg0, %c0_i32 : i32, i32
  }
  func.func @transform_1(%arg0: i32) -> (i32, i32) {
    %c0_i32 = arith.constant 0 : i32
    %c0_i32_0 = arith.constant 0 : i32
    %c0_i32_1 = arith.constant 0 : i32
    return %c0_i32, %c0_i32_0 : i32, i32
  }
  func.func @transform_2(%arg0: i32) -> (i32, i32) {
    %c0_i32 = arith.constant 0 : i32
    %c0_i32_0 = arith.constant 0 : i32
    %c0_i32_1 = arith.constant 0 : i32
    return %c0_i32, %c0_i32_0 : i32, i32
  }
  func.func @transform_3(%arg0: i32) -> (i32, i32) {
    %c0_i32 = arith.constant 0 : i32
    %c0_i32_0 = arith.constant 0 : i32
    %c0_i32_1 = arith.constant 0 : i32
    return %c0_i32, %c0_i32_0 : i32, i32
  }
  func.func @transform_4(%arg0: i32) -> (i32, i32) {
    %c0_i32 = arith.constant 0 : i32
    %c0_i32_0 = arith.constant 0 : i32
    %c0_i32_1 = arith.constant 0 : i32
    return %c0_i32, %c0_i32_0 : i32, i32
  }
  func.func @transform_5(%arg0: i32) -> (i32, i32) {
    %c0_i32 = arith.constant 0 : i32
    %c0_i32_0 = arith.constant 0 : i32
    %c0_i32_1 = arith.constant 0 : i32
    return %c0_i32, %c0_i32_0 : i32, i32
  }
  func.func @transform_6(%arg0: i32) -> (i32, i32) {
    %c0_i32 = arith.constant 0 : i32
    %c0_i32_0 = arith.constant 0 : i32
    %c0_i32_1 = arith.constant 0 : i32
    return %c0_i32, %c0_i32_0 : i32, i32
  }
  func.func @transform_7(%arg0: i32) -> (i32, i32) {
    %c0_i32 = arith.constant 0 : i32
    %c0_i32_0 = arith.constant 0 : i32
    %c0_i32_1 = arith.constant 0 : i32
    return %c0_i32, %c0_i32_0 : i32, i32
  }
  func.func @transform_8(%arg0: i32) -> (i32, i32) {
    %c0_i32 = arith.constant 0 : i32
    %c0_i32_0 = arith.constant 0 : i32
    %c0_i32_1 = arith.constant 0 : i32
    return %c0_i32, %c0_i32_0 : i32, i32
  }
  func.func @transform_9(%arg0: i32) -> (i32, i32) {
    %c0_i32 = arith.constant 0 : i32
    %c0_i32_0 = arith.constant 0 : i32
    return %arg0, %c0_i32 : i32, i32
  }
}

</mosaic_0001>

<llo_original>
// kernel: pinn_forward.1
$region0: #{pinn_forward.1}
  #allocation0 [shape = 'u32[]', space=smem, size = 0x4, offset = 0x4, fixed_abs, tag = 'smem constant byte address 0x4 - core index']
  #allocation1 [shape = 'u32[72,128]{1,0:T(1,128)}', space=vmem, size = 0x9000, scoped, tag = 'internal scratch']
  %s0 = inlined_call_operand.vmem [shape: f32[1024,2], index: 0, kind: input, shape index: {}]
  %s1 = inlined_call_operand.vmem [shape: f32[2,128], index: 1, kind: input, shape index: {}]
  %s2 = inlined_call_operand.vmem [shape: f32[1,128], index: 2, kind: input, shape index: {}]
  %s3 = inlined_call_operand.vmem [shape: bf16[128,128], index: 3, kind: input, shape index: {}]
  %s4 = inlined_call_operand.vmem [shape: f32[1,128], index: 4, kind: input, shape index: {}]
  %s5 = inlined_call_operand.vmem [shape: bf16[128,128], index: 5, kind: input, shape index: {}]
  %s6 = inlined_call_operand.vmem [shape: f32[1,128], index: 6, kind: input, shape index: {}]
  %s7 = inlined_call_operand.vmem [shape: f32[128,2], index: 7, kind: input, shape index: {}]
  %s8 = inlined_call_operand.vmem [shape: f32[1,2], index: 8, kind: input, shape index: {}]
  %s9 = inlined_call_operand.vmem [shape: f32[1024,2], index: 9, kind: output, shape index: {}]
  %s10 = sld [smem:[#allocation0]]
  $region69: #{pinn_forward.1} parent=0
    _
  %s12 = ssub.s32 1, %s10
  %s13 = scalar_select 0, %s12, %s10
  loop: start=0, step=1, limit=4
  $region2: #{pinn_forward.1} parent=0 // loop_pre_header
    _
  $region3: #{pinn_forward.1} parent=0 // loop_header
    %s15 = sphi 0, %s19
    %p16 = scmp.ge.s32.totalorder %s15, 4
    %s25 = sphi 0, %s27
    %s28 = sphi 0, %s25
    %s29 = sphi 0, %s28
    %s45 = sphi 0, %s29
    %s49 = sphi 0, %s49
    %s51 = sphi 0, %s49
    %s52 = sphi 0, %s51
    %s66 = sphi 0, %s52
    %s70 = sphi 0, %s70
    %s72 = sphi 0, %s70
    %s73 = sphi 0, %s72
    %s87 = sphi 0, %s73
    %s91 = sphi 0, %s91
    %s93 = sphi 0, %s91
    %s94 = sphi 0, %s93
    %s108 = sphi 0, %s94
    %s112 = sphi 0, %s112
    %s114 = sphi 0, %s112
    %s115 = sphi 0, %s114
    %s129 = sphi 0, %s115
    %s133 = sphi 0, %s133
    %s135 = sphi 0, %s133
    %s136 = sphi 0, %s135
    %s150 = sphi 0, %s136
    %s154 = sphi 0, %s154
    %s156 = sphi 0, %s154
    %s157 = sphi 0, %s156
    %s171 = sphi 0, %s157
    %s175 = sphi 0, %s175
    %s177 = sphi 0, %s175
    %s178 = sphi 0, %s177
    %s192 = sphi 0, %s178
    %s196 = sphi 0, %s196
    %s198 = sphi 0, %s196
    %s199 = sphi 0, %s198
    %s213 = sphi 0, %s199
    %s219 = sphi 0, %s221
    %s222 = sphi 0, %s219
    %s223 = sphi 0, %s222
    %s239 = sphi 0, %s223
  $region4: #{pinn_forward.1} parent=0 // loop_header_branch
    %18 = sbr.rel (%p16) target = $region8
  $region5: #{pinn_forward.1} parent=0 // loop_body
    %s20 = ssub.s32 %s15, 1
    %s21 = ssub.s32 %s15, 2
    %s22 = sadd.s32 %s15, 1
    %s23 = ssub.s32 %s15, %s22
    %p24 = scmp.eq.s32.totalorder %s23, 0
    %s26 = sadd.s32 %s25, 1
    %s27 = scalar_select %p24, %s25, %s26
    %p30 = pneg %p24
    %p31 = scmp.eq.s32.totalorder %s15, 1
    %p32 = por %p30, %p31
    %p33 = scmp.ne.s32.totalorder %s25, %s28
    %p34 = scmp.eq.s32.totalorder %s15, 0
    %p35 = por %p33, %p34
    %p36 = scmp.ne.s32.totalorder %s25, %s28
    %p37 = scmp.eq.s32.totalorder %s20, 1
    %p38 = por %p36, %p37
    %p39 = scmp.ne.s32.totalorder %s28, %s29
    %p40 = scmp.eq.s32.totalorder %s20, 0
    %p41 = por %p39, %p40
    %p42 = scmp.ne.s32.totalorder %s28, %s29
    %p43 = scmp.eq.s32.totalorder %s21, 1
    %p44 = por %p42, %p43
    %p46 = scmp.ne.s32.totalorder %s29, %s45
    %p47 = scmp.eq.s32.totalorder %s21, 0
    %p48 = por %p46, %p47
    %s50 = sadd.s32 %s49, 1
    %p53 = scmp.eq.s32.totalorder %s15, 1
    %p54 = scmp.ne.s32.totalorder %s49, %s51
    %p55 = scmp.eq.s32.totalorder %s15, 0
    %p56 = por %p54, %p55
    %p57 = scmp.ne.s32.totalorder %s49, %s51
    %p58 = scmp.eq.s32.totalorder %s20, 1
    %p59 = por %p57, %p58
    %p60 = scmp.ne.s32.totalorder %s51, %s52
    %p61 = scmp.eq.s32.totalorder %s20, 0
    %p62 = por %p60, %p61
    %p63 = scmp.ne.s32.totalorder %s51, %s52
    %p64 = scmp.eq.s32.totalorder %s21, 1
    %p65 = por %p63, %p64
    %p67 = scmp.ne.s32.totalorder %s52, %s66
    %p68 = scmp.eq.s32.totalorder %s21, 0
    %p69 = por %p67, %p68
    %s71 = sadd.s32 %s70, 1
    %p74 = scmp.eq.s32.totalorder %s15, 1
    %p75 = scmp.ne.s32.totalorder %s70, %s72
    %p76 = scmp.eq.s32.totalorder %s15, 0
    %p77 = por %p75, %p76
    %p78 = scmp.ne.s32.totalorder %s70, %s72
    %p79 = scmp.eq.s32.totalorder %s20, 1
    %p80 = por %p78, %p79
    %p81 = scmp.ne.s32.totalorder %s72, %s73
    %p82 = scmp.eq.s32.totalorder %s20, 0
    %p83 = por %p81, %p82
    %p84 = scmp.ne.s32.totalorder %s72, %s73
    %p85 = scmp.eq.s32.totalorder %s21, 1
    %p86 = por %p84, %p85
    %p88 = scmp.ne.s32.totalorder %s73, %s87
    %p89 = scmp.eq.s32.totalorder %s21, 0
    %p90 = por %p88, %p89
    %s92 = sadd.s32 %s91, 1
    %p95 = scmp.eq.s32.totalorder %s15, 1
    %p96 = scmp.ne.s32.totalorder %s91, %s93
    %p97 = scmp.eq.s32.totalorder %s15, 0
    %p98 = por %p96, %p97
    %p99 = scmp.ne.s32.totalorder %s91, %s93
    %p100 = scmp.eq.s32.totalorder %s20, 1
    %p101 = por %p99, %p100
    %p102 = scmp.ne.s32.totalorder %s93, %s94
    %p103 = scmp.eq.s32.totalorder %s20, 0
    %p104 = por %p102, %p103
    %p105 = scmp.ne.s32.totalorder %s93, %s94
    %p106 = scmp.eq.s32.totalorder %s21, 1
    %p107 = por %p105, %p106
    %p109 = scmp.ne.s32.totalorder %s94, %s108
    %p110 = scmp.eq.s32.totalorder %s21, 0
    %p111 = por %p109, %p110
    %s113 = sadd.s32 %s112, 1
    %p116 = scmp.eq.s32.totalorder %s15, 1
    %p117 = scmp.ne.s32.totalorder %s112, %s114
    %p118 = scmp.eq.s32.totalorder %s15, 0
    %p119 = por %p117, %p118
    %p120 = scmp.ne.s32.totalorder %s112, %s114
    %p121 = scmp.eq.s32.totalorder %s20, 1
    %p122 = por %p120, %p121
    %p123 = scmp.ne.s32.totalorder %s114, %s115
    %p124 = scmp.eq.s32.totalorder %s20, 0
    %p125 = por %p123, %p124
    %p126 = scmp.ne.s32.totalorder %s114, %s115
    %p127 = scmp.eq.s32.totalorder %s21, 1
    %p128 = por %p126, %p127
    %p130 = scmp.ne.s32.totalorder %s115, %s129
    %p131 = scmp.eq.s32.totalorder %s21, 0
    %p132 = por %p130, %p131
    %s134 = sadd.s32 %s133, 1
    %p137 = scmp.eq.s32.totalorder %s15, 1
    %p138 = scmp.ne.s32.totalorder %s133, %s135
    %p139 = scmp.eq.s32.totalorder %s15, 0
    %p140 = por %p138, %p139
    %p141 = scmp.ne.s32.totalorder %s133, %s135
    %p142 = scmp.eq.s32.totalorder %s20, 1
    %p143 = por %p141, %p142
    %p144 = scmp.ne.s32.totalorder %s135, %s136
    %p145 = scmp.eq.s32.totalorder %s20, 0
    %p146 = por %p144, %p145
    %p147 = scmp.ne.s32.totalorder %s135, %s136
    %p148 = scmp.eq.s32.totalorder %s21, 1
    %p149 = por %p147, %p148
    %p151 = scmp.ne.s32.totalorder %s136, %s150
    %p152 = scmp.eq.s32.totalorder %s21, 0
    %p153 = por %p151, %p152
    %s155 = sadd.s32 %s154, 1
    %p158 = scmp.eq.s32.totalorder %s15, 1
    %p159 = scmp.ne.s32.totalorder %s154, %s156
    %p160 = scmp.eq.s32.totalorder %s15, 0
    %p161 = por %p159, %p160
    %p162 = scmp.ne.s32.totalorder %s154, %s156
    %p163 = scmp.eq.s32.totalorder %s20, 1
    %p164 = por %p162, %p163
    %p165 = scmp.ne.s32.totalorder %s156, %s157
    %p166 = scmp.eq.s32.totalorder %s20, 0
    %p167 = por %p165, %p166
    %p168 = scmp.ne.s32.totalorder %s156, %s157
    %p169 = scmp.eq.s32.totalorder %s21, 1
    %p170 = por %p168, %p169
    %p172 = scmp.ne.s32.totalorder %s157, %s171
    %p173 = scmp.eq.s32.totalorder %s21, 0
    %p174 = por %p172, %p173
    %s176 = sadd.s32 %s175, 1
    %p179 = scmp.eq.s32.totalorder %s15, 1
    %p180 = scmp.ne.s32.totalorder %s175, %s177
    %p181 = scmp.eq.s32.totalorder %s15, 0
    %p182 = por %p180, %p181
    %p183 = scmp.ne.s32.totalorder %s175, %s177
    %p184 = scmp.eq.s32.totalorder %s20, 1
    %p185 = por %p183, %p184
    %p186 = scmp.ne.s32.totalorder %s177, %s178
    %p187 = scmp.eq.s32.totalorder %s20, 0
    %p188 = por %p186, %p187
    %p189 = scmp.ne.s32.totalorder %s177, %s178
    %p190 = scmp.eq.s32.totalorder %s21, 1
    %p191 = por %p189, %p190
    %p193 = scmp.ne.s32.totalorder %s178, %s192
    %p194 = scmp.eq.s32.totalorder %s21, 0
    %p195 = por %p193, %p194
    %s197 = sadd.s32 %s196, 1
    %p200 = scmp.eq.s32.totalorder %s15, 1
    %p201 = scmp.ne.s32.totalorder %s196, %s198
    %p202 = scmp.eq.s32.totalorder %s15, 0
    %p203 = por %p201, %p202
    %p204 = scmp.ne.s32.totalorder %s196, %s198
    %p205 = scmp.eq.s32.totalorder %s20, 1
    %p206 = por %p204, %p205
    %p207 = scmp.ne.s32.totalorder %s198, %s199
    %p208 = scmp.eq.s32.totalorder %s20, 0
    %p209 = por %p207, %p208
    %p210 = scmp.ne.s32.totalorder %s198, %s199
    %p211 = scmp.eq.s32.totalorder %s21, 1
    %p212 = por %p210, %p211
    %p214 = scmp.ne.s32.totalorder %s199, %s213
    %p215 = scmp.eq.s32.totalorder %s21, 0
    %p216 = por %p214, %p215
    %s217 = ssub.s32 %s15, %s22
    %p218 = scmp.eq.s32.totalorder %s217, 0
    %s220 = sadd.s32 %s219, 1
    %s221 = scalar_select %p218, %s219, %s220
    %p224 = pneg %p218
    %p225 = scmp.eq.s32.totalorder %s15, 1
    %p226 = por %p224, %p225
    %p227 = scmp.ne.s32.totalorder %s219, %s222
    %p228 = scmp.eq.s32.totalorder %s15, 0
    %p229 = por %p227, %p228
    %p230 = scmp.ne.s32.totalorder %s219, %s222
    %p231 = scmp.eq.s32.totalorder %s20, 1
    %p232 = por %p230, %p231
    %p233 = scmp.ne.s32.totalorder %s222, %s223
    %p234 = scmp.eq.s32.totalorder %s20, 0
    %p235 = por %p233, %p234
    %p236 = scmp.ne.s32.totalorder %s222, %s223
    %p237 = scmp.eq.s32.totalorder %s21, 1
    %p238 = por %p236, %p237
    %p240 = scmp.ne.s32.totalorder %s223, %s239
    %p241 = scmp.eq.s32.totalorder %s21, 0
    %p242 = por %p240, %p241
    %p243 = scmp.le.s32.totalorder 1, %s15
    %p244 = scmp.lt.s32.totalorder %s15, 3
    %p245 = pnand %p243, %p244
    %p246 = pneg %p245
    // Predicated region
    $region9: #{pinn_forward.1} parent=5 // pred_check
      _
    $region10: #{pinn_forward.1} parent=5 // pred_check_branch
      %248 = sbr.rel (%p245) target = $region12
    $region11: #{pinn_forward.1} parent=5 // pred_region
      %s249 = ssub.s32 %s15, 1
      // Predicated region
      $region13: #{pinn_forward.1} parent=11 // pred_check
        %p250 = pneg %p62
      $region14: #{pinn_forward.1} parent=11 // pred_check_branch
        %252 = sbr.rel (%p250) target = $region16
      $region15: #{pinn_forward.1} parent=11 // pred_region
        _
      $region16: #{pinn_forward.1} parent=11 // pred_fallthru
        _
      // Predicated region
      $region17: #{pinn_forward.1} parent=11 // pred_check
        %p253 = pneg %p83
      $region18: #{pinn_forward.1} parent=11 // pred_check_branch
        %255 = sbr.rel (%p253) target = $region20
      $region19: #{pinn_forward.1} parent=11 // pred_region
        _
      $region20: #{pinn_forward.1} parent=11 // pred_fallthru
        _
      // Predicated region
      $region21: #{pinn_forward.1} parent=11 // pred_check
        %p256 = pneg %p104
      $region22: #{pinn_forward.1} parent=11 // pred_check_branch
        %258 = sbr.rel (%p256) target = $region24
      $region23: #{pinn_forward.1} parent=11 // pred_region
        _
      $region24: #{pinn_forward.1} parent=11 // pred_fallthru
        _
      // Predicated region
      $region25: #{pinn_forward.1} parent=11 // pred_check
        %p259 = pneg %p125
      $region26: #{pinn_forward.1} parent=11 // pred_check_branch
        %261 = sbr.rel (%p259) target = $region28
      $region27: #{pinn_forward.1} parent=11 // pred_region
        _
      $region28: #{pinn_forward.1} parent=11 // pred_fallthru
        _
      // Predicated region
      $region29: #{pinn_forward.1} parent=11 // pred_check
        %p262 = pneg %p146
      $region30: #{pinn_forward.1} parent=11 // pred_check_branch
        %264 = sbr.rel (%p262) target = $region32
      $region31: #{pinn_forward.1} parent=11 // pred_region
        _
      $region32: #{pinn_forward.1} parent=11 // pred_fallthru
        _
      // Predicated region
      $region33: #{pinn_forward.1} parent=11 // pred_check
        %p265 = pneg %p167
      $region34: #{pinn_forward.1} parent=11 // pred_check_branch
        %267 = sbr.rel (%p265) target = $region36
      $region35: #{pinn_forward.1} parent=11 // pred_region
        _
      $region36: #{pinn_forward.1} parent=11 // pred_fallthru
        _
      // Predicated region
      $region37: #{pinn_forward.1} parent=11 // pred_check
        %p268 = pneg %p188
      $region38: #{pinn_forward.1} parent=11 // pred_check_branch
        %270 = sbr.rel (%p268) target = $region40
      $region39: #{pinn_forward.1} parent=11 // pred_region
        _
      $region40: #{pinn_forward.1} parent=11 // pred_fallthru
        _
      // Predicated region
      $region41: #{pinn_forward.1} parent=11 // pred_check
        %p271 = pneg %p209
      $region42: #{pinn_forward.1} parent=11 // pred_check_branch
        %273 = sbr.rel (%p271) target = $region44
      $region43: #{pinn_forward.1} parent=11 // pred_region
        _
      $region44: #{pinn_forward.1} parent=11 // pred_fallthru
        _
    $region12: #{pinn_forward.1} parent=5 // pred_fallthru
      _
    %p274 = scmp.lt.s32.totalorder %s15, 2
    // Predicated region
    $region45: #{pinn_forward.1} parent=5 // pred_check
      %p275 = pneg %p274
    $region46: #{pinn_forward.1} parent=5 // pred_check_branch
      %277 = sbr.rel (%p275) target = $region48
    $region47: #{pinn_forward.1} parent=5 // pred_region
      // Predicated region
      $region49: #{pinn_forward.1} parent=47 // pred_check
        %p278 = pneg %p35
      $region50: #{pinn_forward.1} parent=47 // pred_check_branch
        %280 = sbr.rel (%p278) target = $region52
      $region51: #{pinn_forward.1} parent=47 // pred_region
        %s281 = smul.u32 64, %s15
        %p282 = scmp.lt.s32.totalorder %s281, 127
        %s283 = scalar_select %p282, %s281, 127
        %s284 = smul.addr %s283, 8
        %s285 = scalar_lea.vmem %s0, %s284
        %s286 = smul.u32 64, %s15
      $region52: #{pinn_forward.1} parent=47 // pred_fallthru
        _
    $region48: #{pinn_forward.1} parent=5 // pred_fallthru
      _
    %p287 = scmp.le.s32.totalorder 1, %s15
    %p288 = scmp.lt.s32.totalorder %s15, 3
    %p289 = pnand %p287, %p288
    %p290 = pneg %p289
    // Predicated region
    $region53: #{pinn_forward.1} parent=5 // pred_check
      _
    $region54: #{pinn_forward.1} parent=5 // pred_check_branch
      %292 = sbr.rel (%p289) target = $region56
    $region55: #{pinn_forward.1} parent=5 // pred_region
      %s293 = ssub.s32 %s15, 1
      %s294 = smul.u32 64, %s20
      %p295 = scmp.lt.s32.totalorder %s294, 127
      %s296 = scalar_select %p295, %s294, 127
      %s297 = smul.addr %s296, 8
      %s298 = scalar_lea.vmem %s0, %s297
      %p299 = pneg %p41
      %p300 = pneg %p38
      %p301 = pneg %p62
      %p302 = pneg %p59
      %p303 = pneg %p83
      %p304 = pneg %p80
      %p305 = pneg %p104
      %p306 = pneg %p101
      %p307 = pneg %p125
      %p308 = pneg %p122
      %p309 = pneg %p146
      %p310 = pneg %p143
      %p311 = pneg %p167
      %p312 = pneg %p164
      %p313 = pneg %p188
      %p314 = pneg %p185
      %p315 = pneg %p209
      %p316 = pneg %p206
      %p317 = pneg %p235
      %p318 = pneg %p232
      %s319 = smul.u32 64, %s20
      %p320 = scmp.lt.s32.totalorder %s319, 127
      %s321 = scalar_select %p320, %s319, 127
      %s322 = smul.addr %s321, 8
      %s323 = scalar_lea.vmem %s9, %s322
      %s324 = smul.u32 64, %s20
      %p325 = scmp.lt.s32.totalorder %s324, 127
      %s326 = scalar_select %p325, %s324, 127
      %s327 = smul.addr %s326, 8
      %s328 = scalar_lea.vmem %s0, %s327
      %s329 = smul.u32 64, %s20
      %s330 = smul.u32 64, %s20
      %p331 = scmp.lt.s32.totalorder %s330, 127
      %s332 = scalar_select %p331, %s330, 127
      %s333 = smul.addr %s332, 8
      %s334 = scalar_lea.vmem %s9, %s333
      %s335 = smul.u32 64, %s20
      %v336 = vld [vmem:[%s328] sm:$0xff]
      %v337 = vld [vmem:[%s328 + $0x8] sm:$0xff]
      %v338 = vld [vmem:[%s328 + $0x10] sm:$0xff]
      %v339 = vld [vmem:[%s328 + $0x18] sm:$0xff]
      %v340 = vld [vmem:[%s328 + $0x20] sm:$0xff]
      %v341 = vld [vmem:[%s328 + $0x28] sm:$0xff]
      %v342 = vld [vmem:[%s328 + $0x30] sm:$0xff]
      %v343 = vld [vmem:[%s328 + $0x38] sm:$0xff]
      %v344 = vld [vmem:[%s328 + $0x40] sm:$0xff]
      %v345 = vld [vmem:[%s328 + $0x48] sm:$0xff]
      %v346 = vld [vmem:[%s328 + $0x50] sm:$0xff]
      %v347 = vld [vmem:[%s328 + $0x58] sm:$0xff]
      %v348 = vld [vmem:[%s328 + $0x60] sm:$0xff]
      %v349 = vld [vmem:[%s328 + $0x68] sm:$0xff]
      %v350 = vld [vmem:[%s328 + $0x70] sm:$0xff]
      %v351 = vld [vmem:[%s328 + $0x78] sm:$0xff]
      %v352 = vld [vmem:[%s328 + $0x80] sm:$0xff]
      %v353 = vld [vmem:[%s328 + $0x88] sm:$0xff]
      %v354 = vld [vmem:[%s328 + $0x90] sm:$0xff]
      %v355 = vld [vmem:[%s328 + $0x98] sm:$0xff]
      %v356 = vld [vmem:[%s328 + $0xa0] sm:$0xff]
      %v357 = vld [vmem:[%s328 + $0xa8] sm:$0xff]
      %v358 = vld [vmem:[%s328 + $0xb0] sm:$0xff]
      %v359 = vld [vmem:[%s328 + $0xb8] sm:$0xff]
      %v360 = vld [vmem:[%s328 + $0xc0] sm:$0xff]
      %v361 = vld [vmem:[%s328 + $0xc8] sm:$0xff]
      %v362 = vld [vmem:[%s328 + $0xd0] sm:$0xff]
      %v363 = vld [vmem:[%s328 + $0xd8] sm:$0xff]
      %v364 = vld [vmem:[%s328 + $0xe0] sm:$0xff]
      %v365 = vld [vmem:[%s328 + $0xe8] sm:$0xff]
      %v366 = vld [vmem:[%s328 + $0xf0] sm:$0xff]
      %v367 = vld [vmem:[%s328 + $0xf8] sm:$0xff]
      %v368 = vld [vmem:[%s328 + $0x100] sm:$0xff]
      %v369 = vld [vmem:[%s328 + $0x108] sm:$0xff]
      %v370 = vld [vmem:[%s328 + $0x110] sm:$0xff]
      %v371 = vld [vmem:[%s328 + $0x118] sm:$0xff]
      %v372 = vld [vmem:[%s328 + $0x120] sm:$0xff]
      %v373 = vld [vmem:[%s328 + $0x128] sm:$0xff]
      %v374 = vld [vmem:[%s328 + $0x130] sm:$0xff]
      %v375 = vld [vmem:[%s328 + $0x138] sm:$0xff]
      %v376 = vld [vmem:[%s328 + $0x140] sm:$0xff]
      %v377 = vld [vmem:[%s328 + $0x148] sm:$0xff]
      %v378 = vld [vmem:[%s328 + $0x150] sm:$0xff]
      %v379 = vld [vmem:[%s328 + $0x158] sm:$0xff]
      %v380 = vld [vmem:[%s328 + $0x160] sm:$0xff]
      %v381 = vld [vmem:[%s328 + $0x168] sm:$0xff]
      %v382 = vld [vmem:[%s328 + $0x170] sm:$0xff]
      %v383 = vld [vmem:[%s328 + $0x178] sm:$0xff]
      %v384 = vld [vmem:[%s328 + $0x180] sm:$0xff]
      %v385 = vld [vmem:[%s328 + $0x188] sm:$0xff]
      %v386 = vld [vmem:[%s328 + $0x190] sm:$0xff]
      %v387 = vld [vmem:[%s328 + $0x198] sm:$0xff]
      %v388 = vld [vmem:[%s328 + $0x1a0] sm:$0xff]
      %v389 = vld [vmem:[%s328 + $0x1a8] sm:$0xff]
      %v390 = vld [vmem:[%s328 + $0x1b0] sm:$0xff]
      %v391 = vld [vmem:[%s328 + $0x1b8] sm:$0xff]
      %v392 = vld [vmem:[%s328 + $0x1c0] sm:$0xff]
      %v393 = vld [vmem:[%s328 + $0x1c8] sm:$0xff]
      %v394 = vld [vmem:[%s328 + $0x1d0] sm:$0xff]
      %v395 = vld [vmem:[%s328 + $0x1d8] sm:$0xff]
      %v396 = vld [vmem:[%s328 + $0x1e0] sm:$0xff]
      %v397 = vld [vmem:[%s328 + $0x1e8] sm:$0xff]
      %v398 = vld [vmem:[%s328 + $0x1f0] sm:$0xff]
      %v399 = vld [vmem:[%s328 + $0x1f8] sm:$0xff]
      %v400 = vld [vmem:[%s1] sm:$0x1]
      %402 = vset.pattern.permute.xlu0 0
      %403 = vperm.xlu0 %402, %v336
      %v404 = vpop.permute.xlu0 %403
      %407 = vset.pattern.permute.xlu0 0
      %408 = vperm.xlu0 %407, %v337
      %v409 = vpop.permute.xlu0 %408
      %412 = vset.pattern.permute.xlu0 0
      %413 = vperm.xlu0 %412, %v338
      %v414 = vpop.permute.xlu0 %413
      %417 = vset.pattern.permute.xlu0 0
      %418 = vperm.xlu0 %417, %v339
      %v419 = vpop.permute.xlu0 %418
      %422 = vset.pattern.permute.xlu0 0
      %423 = vperm.xlu0 %422, %v340
      %v424 = vpop.permute.xlu0 %423
      %427 = vset.pattern.permute.xlu0 0
      %428 = vperm.xlu0 %427, %v341
      %v429 = vpop.permute.xlu0 %428
      %432 = vset.pattern.permute.xlu0 0
      %433 = vperm.xlu0 %432, %v342
      %v434 = vpop.permute.xlu0 %433
      %437 = vset.pattern.permute.xlu0 0
      %438 = vperm.xlu0 %437, %v343
      %v439 = vpop.permute.xlu0 %438
      %442 = vset.pattern.permute.xlu0 0
      %443 = vperm.xlu0 %442, %v344
      %v444 = vpop.permute.xlu0 %443
      %447 = vset.pattern.permute.xlu0 0
      %448 = vperm.xlu0 %447, %v345
      %v449 = vpop.permute.xlu0 %448
      %452 = vset.pattern.permute.xlu0 0
      %453 = vperm.xlu0 %452, %v346
      %v454 = vpop.permute.xlu0 %453
      %457 = vset.pattern.permute.xlu0 0
      %458 = vperm.xlu0 %457, %v347
      %v459 = vpop.permute.xlu0 %458
      %462 = vset.pattern.permute.xlu0 0
      %463 = vperm.xlu0 %462, %v348
      %v464 = vpop.permute.xlu0 %463
      %467 = vset.pattern.permute.xlu0 0
      %468 = vperm.xlu0 %467, %v349
      %v469 = vpop.permute.xlu0 %468
      %472 = vset.pattern.permute.xlu0 0
      %473 = vperm.xlu0 %472, %v350
      %v474 = vpop.permute.xlu0 %473
      %477 = vset.pattern.permute.xlu0 0
      %478 = vperm.xlu0 %477, %v351
      %v479 = vpop.permute.xlu0 %478
      %482 = vset.pattern.permute.xlu0 0
      %483 = vperm.xlu0 %482, %v352
      %v484 = vpop.permute.xlu0 %483
      %487 = vset.pattern.permute.xlu0 0
      %488 = vperm.xlu0 %487, %v353
      %v489 = vpop.permute.xlu0 %488
      %492 = vset.pattern.permute.xlu0 0
      %493 = vperm.xlu0 %492, %v354
      %v494 = vpop.permute.xlu0 %493
      %497 = vset.pattern.permute.xlu0 0
      %498 = vperm.xlu0 %497, %v355
      %v499 = vpop.permute.xlu0 %498
      %502 = vset.pattern.permute.xlu0 0
      %503 = vperm.xlu0 %502, %v356
      %v504 = vpop.permute.xlu0 %503
      %507 = vset.pattern.permute.xlu0 0
      %508 = vperm.xlu0 %507, %v357
      %v509 = vpop.permute.xlu0 %508
      %512 = vset.pattern.permute.xlu0 0
      %513 = vperm.xlu0 %512, %v358
      %v514 = vpop.permute.xlu0 %513
      %517 = vset.pattern.permute.xlu0 0
      %518 = vperm.xlu0 %517, %v359
      %v519 = vpop.permute.xlu0 %518
      %522 = vset.pattern.permute.xlu0 0
      %523 = vperm.xlu0 %522, %v360
      %v524 = vpop.permute.xlu0 %523
      %527 = vset.pattern.permute.xlu0 0
      %528 = vperm.xlu0 %527, %v361
      %v529 = vpop.permute.xlu0 %528
      %532 = vset.pattern.permute.xlu0 0
      %533 = vperm.xlu0 %532, %v362
      %v534 = vpop.permute.xlu0 %533
      %537 = vset.pattern.permute.xlu0 0
      %538 = vperm.xlu0 %537, %v363
      %v539 = vpop.permute.xlu0 %538
      %542 = vset.pattern.permute.xlu0 0
      %543 = vperm.xlu0 %542, %v364
      %v544 = vpop.permute.xlu0 %543
      %547 = vset.pattern.permute.xlu0 0
      %548 = vperm.xlu0 %547, %v365
      %v549 = vpop.permute.xlu0 %548
      %552 = vset.pattern.permute.xlu0 0
      %553 = vperm.xlu0 %552, %v366
      %v554 = vpop.permute.xlu0 %553
      %557 = vset.pattern.permute.xlu0 0
      %558 = vperm.xlu0 %557, %v367
      %v559 = vpop.permute.xlu0 %558
      %562 = vset.pattern.permute.xlu0 0
      %563 = vperm.xlu0 %562, %v368
      %v564 = vpop.permute.xlu0 %563
      %567 = vset.pattern.permute.xlu0 0
      %568 = vperm.xlu0 %567, %v369
      %v569 = vpop.permute.xlu0 %568
      %572 = vset.pattern.permute.xlu0 0
      %573 = vperm.xlu0 %572, %v370
      %v574 = vpop.permute.xlu0 %573
      %577 = vset.pattern.permute.xlu0 0
      %578 = vperm.xlu0 %577, %v371
      %v579 = vpop.permute.xlu0 %578
      %582 = vset.pattern.permute.xlu0 0
      %583 = vperm.xlu0 %582, %v372
      %v584 = vpop.permute.xlu0 %583
      %587 = vset.pattern.permute.xlu0 0
      %588 = vperm.xlu0 %587, %v373
      %v589 = vpop.permute.xlu0 %588
      %592 = vset.pattern.permute.xlu0 0
      %593 = vperm.xlu0 %592, %v374
      %v594 = vpop.permute.xlu0 %593
      %597 = vset.pattern.permute.xlu0 0
      %598 = vperm.xlu0 %597, %v375
      %v599 = vpop.permute.xlu0 %598
      %602 = vset.pattern.permute.xlu0 0
      %603 = vperm.xlu0 %602, %v376
      %v604 = vpop.permute.xlu0 %603
      %607 = vset.pattern.permute.xlu0 0
      %608 = vperm.xlu0 %607, %v377
      %v609 = vpop.permute.xlu0 %608
      %612 = vset.pattern.permute.xlu0 0
      %613 = vperm.xlu0 %612, %v378
      %v614 = vpop.permute.xlu0 %613
      %617 = vset.pattern.permute.xlu0 0
      %618 = vperm.xlu0 %617, %v379
      %v619 = vpop.permute.xlu0 %618
      %622 = vset.pattern.permute.xlu0 0
      %623 = vperm.xlu0 %622, %v380
      %v624 = vpop.permute.xlu0 %623
      %627 = vset.pattern.permute.xlu0 0
      %628 = vperm.xlu0 %627, %v381
      %v629 = vpop.permute.xlu0 %628
      %632 = vset.pattern.permute.xlu0 0
      %633 = vperm.xlu0 %632, %v382
      %v634 = vpop.permute.xlu0 %633
      %637 = vset.pattern.permute.xlu0 0
      %638 = vperm.xlu0 %637, %v383
      %v639 = vpop.permute.xlu0 %638
      %642 = vset.pattern.permute.xlu0 0
      %643 = vperm.xlu0 %642, %v384
      %v644 = vpop.permute.xlu0 %643
      %647 = vset.pattern.permute.xlu0 0
      %648 = vperm.xlu0 %647, %v385
      %v649 = vpop.permute.xlu0 %648
      %652 = vset.pattern.permute.xlu0 0
      %653 = vperm.xlu0 %652, %v386
      %v654 = vpop.permute.xlu0 %653
      %657 = vset.pattern.permute.xlu0 0
      %658 = vperm.xlu0 %657, %v387
      %v659 = vpop.permute.xlu0 %658
      %662 = vset.pattern.permute.xlu0 0
      %663 = vperm.xlu0 %662, %v388
      %v664 = vpop.permute.xlu0 %663
      %667 = vset.pattern.permute.xlu0 0
      %668 = vperm.xlu0 %667, %v389
      %v669 = vpop.permute.xlu0 %668
      %672 = vset.pattern.permute.xlu0 0
      %673 = vperm.xlu0 %672, %v390
      %v674 = vpop.permute.xlu0 %673
      %677 = vset.pattern.permute.xlu0 0
      %678 = vperm.xlu0 %677, %v391
      %v679 = vpop.permute.xlu0 %678
      %682 = vset.pattern.permute.xlu0 0
      %683 = vperm.xlu0 %682, %v392
      %v684 = vpop.permute.xlu0 %683
      %687 = vset.pattern.permute.xlu0 0
      %688 = vperm.xlu0 %687, %v393
      %v689 = vpop.permute.xlu0 %688
      %692 = vset.pattern.permute.xlu0 0
      %693 = vperm.xlu0 %692, %v394
      %v694 = vpop.permute.xlu0 %693
      %697 = vset.pattern.permute.xlu0 0
      %698 = vperm.xlu0 %697, %v395
      %v699 = vpop.permute.xlu0 %698
      %702 = vset.pattern.permute.xlu0 0
      %703 = vperm.xlu0 %702, %v396
      %v704 = vpop.permute.xlu0 %703
      %707 = vset.pattern.permute.xlu0 0
      %708 = vperm.xlu0 %707, %v397
      %v709 = vpop.permute.xlu0 %708
      %712 = vset.pattern.permute.xlu0 0
      %713 = vperm.xlu0 %712, %v398
      %v714 = vpop.permute.xlu0 %713
      %717 = vset.pattern.permute.xlu0 0
      %718 = vperm.xlu0 %717, %v399
      %v719 = vpop.permute.xlu0 %718
      %v721 = vperm.slane %v400, 0
      %v722 = vmul.f32 %v404, %v721
      %v723 = vmul.f32 %v409, %v721
      %v724 = vmul.f32 %v414, %v721
      %v725 = vmul.f32 %v419, %v721
      %v726 = vmul.f32 %v424, %v721
      %v727 = vmul.f32 %v429, %v721
      %v728 = vmul.f32 %v434, %v721
      %v729 = vmul.f32 %v439, %v721
      %v730 = vmul.f32 %v444, %v721
      %v731 = vmul.f32 %v449, %v721
      %v732 = vmul.f32 %v454, %v721
      %v733 = vmul.f32 %v459, %v721
      %v734 = vmul.f32 %v464, %v721
      %v735 = vmul.f32 %v469, %v721
      %v736 = vmul.f32 %v474, %v721
      %v737 = vmul.f32 %v479, %v721
      %v738 = vmul.f32 %v484, %v721
      %v739 = vmul.f32 %v489, %v721
      %v740 = vmul.f32 %v494, %v721
      %v741 = vmul.f32 %v499, %v721
      %v742 = vmul.f32 %v504, %v721
      %v743 = vmul.f32 %v509, %v721
      %v744 = vmul.f32 %v514, %v721
      %v745 = vmul.f32 %v519, %v721
      %v746 = vmul.f32 %v524, %v721
      %v747 = vmul.f32 %v529, %v721
      %v748 = vmul.f32 %v534, %v721
      %v749 = vmul.f32 %v539, %v721
      %v750 = vmul.f32 %v544, %v721
      %v751 = vmul.f32 %v549, %v721
      %v752 = vmul.f32 %v554, %v721
      %v753 = vmul.f32 %v559, %v721
      %v754 = vmul.f32 %v564, %v721
      %v755 = vmul.f32 %v569, %v721
      %v756 = vmul.f32 %v574, %v721
      %v757 = vmul.f32 %v579, %v721
      %v758 = vmul.f32 %v584, %v721
      %v759 = vmul.f32 %v589, %v721
      %v760 = vmul.f32 %v594, %v721
      %v761 = vmul.f32 %v599, %v721
      %v762 = vmul.f32 %v604, %v721
      %v763 = vmul.f32 %v609, %v721
      %v764 = vmul.f32 %v614, %v721
      %v765 = vmul.f32 %v619, %v721
      %v766 = vmul.f32 %v624, %v721
      %v767 = vmul.f32 %v629, %v721
      %v768 = vmul.f32 %v634, %v721
      %v769 = vmul.f32 %v639, %v721
      %v770 = vmul.f32 %v644, %v721
      %v771 = vmul.f32 %v649, %v721
      %v772 = vmul.f32 %v654, %v721
      %v773 = vmul.f32 %v659, %v721
      %v774 = vmul.f32 %v664, %v721
      %v775 = vmul.f32 %v669, %v721
      %v776 = vmul.f32 %v674, %v721
      %v777 = vmul.f32 %v679, %v721
      %v778 = vmul.f32 %v684, %v721
      %v779 = vmul.f32 %v689, %v721
      %v780 = vmul.f32 %v694, %v721
      %v781 = vmul.f32 %v699, %v721
      %v782 = vmul.f32 %v704, %v721
      %v783 = vmul.f32 %v709, %v721
      %v784 = vmul.f32 %v714, %v721
      %v785 = vmul.f32 %v719, %v721
      %v786 = vld [vmem:[%s1 + $0x1] sm:$0x1]
      %787 = vset.pattern.permute.xlu0 1
      %788 = vperm.xlu0 %787, %v336
      %v789 = vpop.permute.xlu0 %788
      %791 = vset.pattern.permute.xlu0 1
      %792 = vperm.xlu0 %791, %v337
      %v793 = vpop.permute.xlu0 %792
      %795 = vset.pattern.permute.xlu0 1
      %796 = vperm.xlu0 %795, %v338
      %v797 = vpop.permute.xlu0 %796
      %799 = vset.pattern.permute.xlu0 1
      %800 = vperm.xlu0 %799, %v339
      %v801 = vpop.permute.xlu0 %800
      %803 = vset.pattern.permute.xlu0 1
      %804 = vperm.xlu0 %803, %v340
      %v805 = vpop.permute.xlu0 %804
      %807 = vset.pattern.permute.xlu0 1
      %808 = vperm.xlu0 %807, %v341
      %v809 = vpop.permute.xlu0 %808
      %811 = vset.pattern.permute.xlu0 1
      %812 = vperm.xlu0 %811, %v342
      %v813 = vpop.permute.xlu0 %812
      %815 = vset.pattern.permute.xlu0 1
      %816 = vperm.xlu0 %815, %v343
      %v817 = vpop.permute.xlu0 %816
      %819 = vset.pattern.permute.xlu0 1
      %820 = vperm.xlu0 %819, %v344
      %v821 = vpop.permute.xlu0 %820
      %823 = vset.pattern.permute.xlu0 1
      %824 = vperm.xlu0 %823, %v345
      %v825 = vpop.permute.xlu0 %824
      %827 = vset.pattern.permute.xlu0 1
      %828 = vperm.xlu0 %827, %v346
      %v829 = vpop.permute.xlu0 %828
      %831 = vset.pattern.permute.xlu0 1
      %832 = vperm.xlu0 %831, %v347
      %v833 = vpop.permute.xlu0 %832
      %835 = vset.pattern.permute.xlu0 1
      %836 = vperm.xlu0 %835, %v348
      %v837 = vpop.permute.xlu0 %836
      %839 = vset.pattern.permute.xlu0 1
      %840 = vperm.xlu0 %839, %v349
      %v841 = vpop.permute.xlu0 %840
      %843 = vset.pattern.permute.xlu0 1
      %844 = vperm.xlu0 %843, %v350
      %v845 = vpop.permute.xlu0 %844
      %847 = vset.pattern.permute.xlu0 1
      %848 = vperm.xlu0 %847, %v351
      %v849 = vpop.permute.xlu0 %848
      %851 = vset.pattern.permute.xlu0 1
      %852 = vperm.xlu0 %851, %v352
      %v853 = vpop.permute.xlu0 %852
      %855 = vset.pattern.permute.xlu0 1
      %856 = vperm.xlu0 %855, %v353
      %v857 = vpop.permute.xlu0 %856
      %859 = vset.pattern.permute.xlu0 1
      %860 = vperm.xlu0 %859, %v354
      %v861 = vpop.permute.xlu0 %860
      %863 = vset.pattern.permute.xlu0 1
      %864 = vperm.xlu0 %863, %v355
      %v865 = vpop.permute.xlu0 %864
      %867 = vset.pattern.permute.xlu0 1
      %868 = vperm.xlu0 %867, %v356
      %v869 = vpop.permute.xlu0 %868
      %871 = vset.pattern.permute.xlu0 1
      %872 = vperm.xlu0 %871, %v357
      %v873 = vpop.permute.xlu0 %872
      %875 = vset.pattern.permute.xlu0 1
      %876 = vperm.xlu0 %875, %v358
      %v877 = vpop.permute.xlu0 %876
      %879 = vset.pattern.permute.xlu0 1
      %880 = vperm.xlu0 %879, %v359
      %v881 = vpop.permute.xlu0 %880
      %883 = vset.pattern.permute.xlu0 1
      %884 = vperm.xlu0 %883, %v360
      %v885 = vpop.permute.xlu0 %884
      %887 = vset.pattern.permute.xlu0 1
      %888 = vperm.xlu0 %887, %v361
      %v889 = vpop.permute.xlu0 %888
      %891 = vset.pattern.permute.xlu0 1
      %892 = vperm.xlu0 %891, %v362
      %v893 = vpop.permute.xlu0 %892
      %895 = vset.pattern.permute.xlu0 1
      %896 = vperm.xlu0 %895, %v363
      %v897 = vpop.permute.xlu0 %896
      %899 = vset.pattern.permute.xlu0 1
      %900 = vperm.xlu0 %899, %v364
      %v901 = vpop.permute.xlu0 %900
      %903 = vset.pattern.permute.xlu0 1
      %904 = vperm.xlu0 %903, %v365
      %v905 = vpop.permute.xlu0 %904
      %907 = vset.pattern.permute.xlu0 1
      %908 = vperm.xlu0 %907, %v366
      %v909 = vpop.permute.xlu0 %908
      %911 = vset.pattern.permute.xlu0 1
      %912 = vperm.xlu0 %911, %v367
      %v913 = vpop.permute.xlu0 %912
      %915 = vset.pattern.permute.xlu0 1
      %916 = vperm.xlu0 %915, %v368
      %v917 = vpop.permute.xlu0 %916
      %919 = vset.pattern.permute.xlu0 1
      %920 = vperm.xlu0 %919, %v369
      %v921 = vpop.permute.xlu0 %920
      %923 = vset.pattern.permute.xlu0 1
      %924 = vperm.xlu0 %923, %v370
      %v925 = vpop.permute.xlu0 %924
      %927 = vset.pattern.permute.xlu0 1
      %928 = vperm.xlu0 %927, %v371
      %v929 = vpop.permute.xlu0 %928
      %931 = vset.pattern.permute.xlu0 1
      %932 = vperm.xlu0 %931, %v372
      %v933 = vpop.permute.xlu0 %932
      %935 = vset.pattern.permute.xlu0 1
      %936 = vperm.xlu0 %935, %v373
      %v937 = vpop.permute.xlu0 %936
      %939 = vset.pattern.permute.xlu0 1
      %940 = vperm.xlu0 %939, %v374
      %v941 = vpop.permute.xlu0 %940
      %943 = vset.pattern.permute.xlu0 1
      %944 = vperm.xlu0 %943, %v375
      %v945 = vpop.permute.xlu0 %944
      %947 = vset.pattern.permute.xlu0 1
      %948 = vperm.xlu0 %947, %v376
      %v949 = vpop.permute.xlu0 %948
      %951 = vset.pattern.permute.xlu0 1
      %952 = vperm.xlu0 %951, %v377
      %v953 = vpop.permute.xlu0 %952
      %955 = vset.pattern.permute.xlu0 1
      %956 = vperm.xlu0 %955, %v378
      %v957 = vpop.permute.xlu0 %956
      %959 = vset.pattern.permute.xlu0 1
      %960 = vperm.xlu0 %959, %v379
      %v961 = vpop.permute.xlu0 %960
      %963 = vset.pattern.permute.xlu0 1
      %964 = vperm.xlu0 %963, %v380
      %v965 = vpop.permute.xlu0 %964
      %967 = vset.pattern.permute.xlu0 1
      %968 = vperm.xlu0 %967, %v381
      %v969 = vpop.permute.xlu0 %968
      %971 = vset.pattern.permute.xlu0 1
      %972 = vperm.xlu0 %971, %v382
      %v973 = vpop.permute.xlu0 %972
      %975 = vset.pattern.permute.xlu0 1
      %976 = vperm.xlu0 %975, %v383
      %v977 = vpop.permute.xlu0 %976
      %979 = vset.pattern.permute.xlu0 1
      %980 = vperm.xlu0 %979, %v384
      %v981 = vpop.permute.xlu0 %980
      %983 = vset.pattern.permute.xlu0 1
      %984 = vperm.xlu0 %983, %v385
      %v985 = vpop.permute.xlu0 %984
      %987 = vset.pattern.permute.xlu0 1
      %988 = vperm.xlu0 %987, %v386
      %v989 = vpop.permute.xlu0 %988
      %991 = vset.pattern.permute.xlu0 1
      %992 = vperm.xlu0 %991, %v387
      %v993 = vpop.permute.xlu0 %992
      %995 = vset.pattern.permute.xlu0 1
      %996 = vperm.xlu0 %995, %v388
      %v997 = vpop.permute.xlu0 %996
      %999 = vset.pattern.permute.xlu0 1
      %1000 = vperm.xlu0 %999, %v389
      %v1001 = vpop.permute.xlu0 %1000
      %1003 = vset.pattern.permute.xlu0 1
      %1004 = vperm.xlu0 %1003, %v390
      %v1005 = vpop.permute.xlu0 %1004
      %1007 = vset.pattern.permute.xlu0 1
      %1008 = vperm.xlu0 %1007, %v391
      %v1009 = vpop.permute.xlu0 %1008
      %1011 = vset.pattern.permute.xlu0 1
      %1012 = vperm.xlu0 %1011, %v392
      %v1013 = vpop.permute.xlu0 %1012
      %1015 = vset.pattern.permute.xlu0 1
      %1016 = vperm.xlu0 %1015, %v393
      %v1017 = vpop.permute.xlu0 %1016
      %1019 = vset.pattern.permute.xlu0 1
      %1020 = vperm.xlu0 %1019, %v394
      %v1021 = vpop.permute.xlu0 %1020
      %1023 = vset.pattern.permute.xlu0 1
      %1024 = vperm.xlu0 %1023, %v395
      %v1025 = vpop.permute.xlu0 %1024
      %1027 = vset.pattern.permute.xlu0 1
      %1028 = vperm.xlu0 %1027, %v396
      %v1029 = vpop.permute.xlu0 %1028
      %1031 = vset.pattern.permute.xlu0 1
      %1032 = vperm.xlu0 %1031, %v397
      %v1033 = vpop.permute.xlu0 %1032
      %1035 = vset.pattern.permute.xlu0 1
      %1036 = vperm.xlu0 %1035, %v398
      %v1037 = vpop.permute.xlu0 %1036
      %1039 = vset.pattern.permute.xlu0 1
      %1040 = vperm.xlu0 %1039, %v399
      %v1041 = vpop.permute.xlu0 %1040
      %v1043 = vperm.slane %v786, 0
      %v1044 = vmul.f32 %v789, %v1043
      %v1045 = vmul.f32 %v793, %v1043
      %v1046 = vmul.f32 %v797, %v1043
      %v1047 = vmul.f32 %v801, %v1043
      %v1048 = vmul.f32 %v805, %v1043
      %v1049 = vmul.f32 %v809, %v1043
      %v1050 = vmul.f32 %v813, %v1043
      %v1051 = vmul.f32 %v817, %v1043
      %v1052 = vmul.f32 %v821, %v1043
      %v1053 = vmul.f32 %v825, %v1043
      %v1054 = vmul.f32 %v829, %v1043
      %v1055 = vmul.f32 %v833, %v1043
      %v1056 = vmul.f32 %v837, %v1043
      %v1057 = vmul.f32 %v841, %v1043
      %v1058 = vmul.f32 %v845, %v1043
      %v1059 = vmul.f32 %v849, %v1043
      %v1060 = vmul.f32 %v853, %v1043
      %v1061 = vmul.f32 %v857, %v1043
      %v1062 = vmul.f32 %v861, %v1043
      %v1063 = vmul.f32 %v865, %v1043
      %v1064 = vmul.f32 %v869, %v1043
      %v1065 = vmul.f32 %v873, %v1043
      %v1066 = vmul.f32 %v877, %v1043
      %v1067 = vmul.f32 %v881, %v1043
      %v1068 = vmul.f32 %v885, %v1043
      %v1069 = vmul.f32 %v889, %v1043
      %v1070 = vmul.f32 %v893, %v1043
      %v1071 = vmul.f32 %v897, %v1043
      %v1072 = vmul.f32 %v901, %v1043
      %v1073 = vmul.f32 %v905, %v1043
      %v1074 = vmul.f32 %v909, %v1043
      %v1075 = vmul.f32 %v913, %v1043
      %v1076 = vmul.f32 %v917, %v1043
      %v1077 = vmul.f32 %v921, %v1043
      %v1078 = vmul.f32 %v925, %v1043
      %v1079 = vmul.f32 %v929, %v1043
      %v1080 = vmul.f32 %v933, %v1043
      %v1081 = vmul.f32 %v937, %v1043
      %v1082 = vmul.f32 %v941, %v1043
      %v1083 = vmul.f32 %v945, %v1043
      %v1084 = vmul.f32 %v949, %v1043
      %v1085 = vmul.f32 %v953, %v1043
      %v1086 = vmul.f32 %v957, %v1043
      %v1087 = vmul.f32 %v961, %v1043
      %v1088 = vmul.f32 %v965, %v1043
      %v1089 = vmul.f32 %v969, %v1043
      %v1090 = vmul.f32 %v973, %v1043
      %v1091 = vmul.f32 %v977, %v1043
      %v1092 = vmul.f32 %v981, %v1043
      %v1093 = vmul.f32 %v985, %v1043
      %v1094 = vmul.f32 %v989, %v1043
      %v1095 = vmul.f32 %v993, %v1043
      %v1096 = vmul.f32 %v997, %v1043
      %v1097 = vmul.f32 %v1001, %v1043
      %v1098 = vmul.f32 %v1005, %v1043
      %v1099 = vmul.f32 %v1009, %v1043
      %v1100 = vmul.f32 %v1013, %v1043
      %v1101 = vmul.f32 %v1017, %v1043
      %v1102 = vmul.f32 %v1021, %v1043
      %v1103 = vmul.f32 %v1025, %v1043
      %v1104 = vmul.f32 %v1029, %v1043
      %v1105 = vmul.f32 %v1033, %v1043
      %v1106 = vmul.f32 %v1037, %v1043
      %v1107 = vmul.f32 %v1041, %v1043
      %v1108 = vadd.f32 %v722, %v1044
      %v1109 = vadd.f32 %v723, %v1045
      %v1110 = vadd.f32 %v724, %v1046
      %v1111 = vadd.f32 %v725, %v1047
      %v1112 = vadd.f32 %v726, %v1048
      %v1113 = vadd.f32 %v727, %v1049
      %v1114 = vadd.f32 %v728, %v1050
      %v1115 = vadd.f32 %v729, %v1051
      %v1116 = vadd.f32 %v730, %v1052
      %v1117 = vadd.f32 %v731, %v1053
      %v1118 = vadd.f32 %v732, %v1054
      %v1119 = vadd.f32 %v733, %v1055
      %v1120 = vadd.f32 %v734, %v1056
      %v1121 = vadd.f32 %v735, %v1057
      %v1122 = vadd.f32 %v736, %v1058
      %v1123 = vadd.f32 %v737, %v1059
      %v1124 = vadd.f32 %v738, %v1060
      %v1125 = vadd.f32 %v739, %v1061
      %v1126 = vadd.f32 %v740, %v1062
      %v1127 = vadd.f32 %v741, %v1063
      %v1128 = vadd.f32 %v742, %v1064
      %v1129 = vadd.f32 %v743, %v1065
      %v1130 = vadd.f32 %v744, %v1066
      %v1131 = vadd.f32 %v745, %v1067
      %v1132 = vadd.f32 %v746, %v1068
      %v1133 = vadd.f32 %v747, %v1069
      %v1134 = vadd.f32 %v748, %v1070
      %v1135 = vadd.f32 %v749, %v1071
      %v1136 = vadd.f32 %v750, %v1072
      %v1137 = vadd.f32 %v751, %v1073
      %v1138 = vadd.f32 %v752, %v1074
      %v1139 = vadd.f32 %v753, %v1075
      %v1140 = vadd.f32 %v754, %v1076
      %v1141 = vadd.f32 %v755, %v1077
      %v1142 = vadd.f32 %v756, %v1078
      %v1143 = vadd.f32 %v757, %v1079
      %v1144 = vadd.f32 %v758, %v1080
      %v1145 = vadd.f32 %v759, %v1081
      %v1146 = vadd.f32 %v760, %v1082
      %v1147 = vadd.f32 %v761, %v1083
      %v1148 = vadd.f32 %v762, %v1084
      %v1149 = vadd.f32 %v763, %v1085
      %v1150 = vadd.f32 %v764, %v1086
      %v1151 = vadd.f32 %v765, %v1087
      %v1152 = vadd.f32 %v766, %v1088
      %v1153 = vadd.f32 %v767, %v1089
      %v1154 = vadd.f32 %v768, %v1090
      %v1155 = vadd.f32 %v769, %v1091
      %v1156 = vadd.f32 %v770, %v1092
      %v1157 = vadd.f32 %v771, %v1093
      %v1158 = vadd.f32 %v772, %v1094
      %v1159 = vadd.f32 %v773, %v1095
      %v1160 = vadd.f32 %v774, %v1096
      %v1161 = vadd.f32 %v775, %v1097
      %v1162 = vadd.f32 %v776, %v1098
      %v1163 = vadd.f32 %v777, %v1099
      %v1164 = vadd.f32 %v778, %v1100
      %v1165 = vadd.f32 %v779, %v1101
      %v1166 = vadd.f32 %v780, %v1102
      %v1167 = vadd.f32 %v781, %v1103
      %v1168 = vadd.f32 %v782, %v1104
      %v1169 = vadd.f32 %v783, %v1105
      %v1170 = vadd.f32 %v784, %v1106
      %v1171 = vadd.f32 %v785, %v1107
      %v1172 = vld [vmem:[%s2] sm:$0x1]
      %v1174 = vperm.slane %v1172, 0
      %v1176 = vadd.f32 %v1108, %v1174
      %v1177 = vadd.f32 %v1109, %v1174
      %v1178 = vadd.f32 %v1110, %v1174
      %v1179 = vadd.f32 %v1111, %v1174
      %v1180 = vadd.f32 %v1112, %v1174
      %v1181 = vadd.f32 %v1113, %v1174
      %v1182 = vadd.f32 %v1114, %v1174
      %v1183 = vadd.f32 %v1115, %v1174
      %v1184 = vadd.f32 %v1116, %v1174
      %v1185 = vadd.f32 %v1117, %v1174
      %v1186 = vadd.f32 %v1118, %v1174
      %v1187 = vadd.f32 %v1119, %v1174
      %v1188 = vadd.f32 %v1120, %v1174
      %v1189 = vadd.f32 %v1121, %v1174
      %v1190 = vadd.f32 %v1122, %v1174
      %v1191 = vadd.f32 %v1123, %v1174
      %v1192 = vadd.f32 %v1124, %v1174
      %v1193 = vadd.f32 %v1125, %v1174
      %v1194 = vadd.f32 %v1126, %v1174
      %v1195 = vadd.f32 %v1127, %v1174
      %v1196 = vadd.f32 %v1128, %v1174
      %v1197 = vadd.f32 %v1129, %v1174
      %v1198 = vadd.f32 %v1130, %v1174
      %v1199 = vadd.f32 %v1131, %v1174
      %v1200 = vadd.f32 %v1132, %v1174
      %v1201 = vadd.f32 %v1133, %v1174
      %v1202 = vadd.f32 %v1134, %v1174
      %v1203 = vadd.f32 %v1135, %v1174
      %v1204 = vadd.f32 %v1136, %v1174
      %v1205 = vadd.f32 %v1137, %v1174
      %v1206 = vadd.f32 %v1138, %v1174
      %v1207 = vadd.f32 %v1139, %v1174
      %v1208 = vadd.f32 %v1140, %v1174
      %v1209 = vadd.f32 %v1141, %v1174
      %v1210 = vadd.f32 %v1142, %v1174
      %v1211 = vadd.f32 %v1143, %v1174
      %v1212 = vadd.f32 %v1144, %v1174
      %v1213 = vadd.f32 %v1145, %v1174
      %v1214 = vadd.f32 %v1146, %v1174
      %v1215 = vadd.f32 %v1147, %v1174
      %v1216 = vadd.f32 %v1148, %v1174
      %v1217 = vadd.f32 %v1149, %v1174
      %v1218 = vadd.f32 %v1150, %v1174
      %v1219 = vadd.f32 %v1151, %v1174
      %v1220 = vadd.f32 %v1152, %v1174
      %v1221 = vadd.f32 %v1153, %v1174
      %v1222 = vadd.f32 %v1154, %v1174
      %v1223 = vadd.f32 %v1155, %v1174
      %v1224 = vadd.f32 %v1156, %v1174
      %v1225 = vadd.f32 %v1157, %v1174
      %v1226 = vadd.f32 %v1158, %v1174
      %v1227 = vadd.f32 %v1159, %v1174
      %v1228 = vadd.f32 %v1160, %v1174
      %v1229 = vadd.f32 %v1161, %v1174
      %v1230 = vadd.f32 %v1162, %v1174
      %v1231 = vadd.f32 %v1163, %v1174
      %v1232 = vadd.f32 %v1164, %v1174
      %v1233 = vadd.f32 %v1165, %v1174
      %v1234 = vadd.f32 %v1166, %v1174
      %v1235 = vadd.f32 %v1167, %v1174
      %v1236 = vadd.f32 %v1168, %v1174
      %v1237 = vadd.f32 %v1169, %v1174
      %v1238 = vadd.f32 %v1170, %v1174
      %v1239 = vadd.f32 %v1171, %v1174
      %v1240 = vtanh.pop %v1176
      %v1241 = vtanh.pop %v1177
      %v1242 = vtanh.pop %v1178
      %v1243 = vtanh.pop %v1179
      %v1244 = vtanh.pop %v1180
      %v1245 = vtanh.pop %v1181
      %v1246 = vtanh.pop %v1182
      %v1247 = vtanh.pop %v1183
      %v1248 = vtanh.pop %v1184
      %v1249 = vtanh.pop %v1185
      %v1250 = vtanh.pop %v1186
      %v1251 = vtanh.pop %v1187
      %v1252 = vtanh.pop %v1188
      %v1253 = vtanh.pop %v1189
      %v1254 = vtanh.pop %v1190
      %v1255 = vtanh.pop %v1191
      %v1256 = vtanh.pop %v1192
      %v1257 = vtanh.pop %v1193
      %v1258 = vtanh.pop %v1194
      %v1259 = vtanh.pop %v1195
      %v1260 = vtanh.pop %v1196
      %v1261 = vtanh.pop %v1197
      %v1262 = vtanh.pop %v1198
      %v1263 = vtanh.pop %v1199
      %v1264 = vtanh.pop %v1200
      %v1265 = vtanh.pop %v1201
      %v1266 = vtanh.pop %v1202
      %v1267 = vtanh.pop %v1203
      %v1268 = vtanh.pop %v1204
      %v1269 = vtanh.pop %v1205
      %v1270 = vtanh.pop %v1206
      %v1271 = vtanh.pop %v1207
      %v1272 = vtanh.pop %v1208
      %v1273 = vtanh.pop %v1209
      %v1274 = vtanh.pop %v1210
      %v1275 = vtanh.pop %v1211
      %v1276 = vtanh.pop %v1212
      %v1277 = vtanh.pop %v1213
      %v1278 = vtanh.pop %v1214
      %v1279 = vtanh.pop %v1215
      %v1280 = vtanh.pop %v1216
      %v1281 = vtanh.pop %v1217
      %v1282 = vtanh.pop %v1218
      %v1283 = vtanh.pop %v1219
      %v1284 = vtanh.pop %v1220
      %v1285 = vtanh.pop %v1221
      %v1286 = vtanh.pop %v1222
      %v1287 = vtanh.pop %v1223
      %v1288 = vtanh.pop %v1224
      %v1289 = vtanh.pop %v1225
      %v1290 = vtanh.pop %v1226
      %v1291 = vtanh.pop %v1227
      %v1292 = vtanh.pop %v1228
      %v1293 = vtanh.pop %v1229
      %v1294 = vtanh.pop %v1230
      %v1295 = vtanh.pop %v1231
      %v1296 = vtanh.pop %v1232
      %v1297 = vtanh.pop %v1233
      %v1298 = vtanh.pop %v1234
      %v1299 = vtanh.pop %v1235
      %v1300 = vtanh.pop %v1236
      %v1301 = vtanh.pop %v1237
      %v1302 = vtanh.pop %v1238
      %v1303 = vtanh.pop %v1239
      %v1304 = vpack.c.bf16 %v1241, %v1240
      %v1305 = vpack.c.bf16 %v1243, %v1242
      %v1306 = vpack.c.bf16 %v1245, %v1244
      %v1307 = vpack.c.bf16 %v1247, %v1246
      %v1308 = vpack.c.bf16 %v1249, %v1248
      %v1309 = vpack.c.bf16 %v1251, %v1250
      %v1310 = vpack.c.bf16 %v1253, %v1252
      %v1311 = vpack.c.bf16 %v1255, %v1254
      %v1312 = vpack.c.bf16 %v1257, %v1256
      %v1313 = vpack.c.bf16 %v1259, %v1258
      %v1314 = vpack.c.bf16 %v1261, %v1260
      %v1315 = vpack.c.bf16 %v1263, %v1262
      %v1316 = vpack.c.bf16 %v1265, %v1264
      %v1317 = vpack.c.bf16 %v1267, %v1266
      %v1318 = vpack.c.bf16 %v1269, %v1268
      %v1319 = vpack.c.bf16 %v1271, %v1270
      %v1320 = vpack.c.bf16 %v1273, %v1272
      %v1321 = vpack.c.bf16 %v1275, %v1274
      %v1322 = vpack.c.bf16 %v1277, %v1276
      %v1323 = vpack.c.bf16 %v1279, %v1278
      %v1324 = vpack.c.bf16 %v1281, %v1280
      %v1325 = vpack.c.bf16 %v1283, %v1282
      %v1326 = vpack.c.bf16 %v1285, %v1284
      %v1327 = vpack.c.bf16 %v1287, %v1286
      %v1328 = vpack.c.bf16 %v1289, %v1288
      %v1329 = vpack.c.bf16 %v1291, %v1290
      %v1330 = vpack.c.bf16 %v1293, %v1292
      %v1331 = vpack.c.bf16 %v1295, %v1294
      %v1332 = vpack.c.bf16 %v1297, %v1296
      %v1333 = vpack.c.bf16 %v1299, %v1298
      %v1334 = vpack.c.bf16 %v1301, %v1300
      %v1335 = vpack.c.bf16 %v1303, %v1302
      %v1336 = vld [vmem:[%s3] sm:$0xf]
      %v1337 = vld [vmem:[%s3 + $0x4] sm:$0xf]
      %v1338 = vld [vmem:[%s3 + $0x8] sm:$0xf]
      %v1339 = vld [vmem:[%s3 + $0xc] sm:$0xf]
      %v1340 = vld [vmem:[%s3 + $0x10] sm:$0xf]
      %v1341 = vld [vmem:[%s3 + $0x14] sm:$0xf]
      %v1342 = vld [vmem:[%s3 + $0x18] sm:$0xf]
      %v1343 = vld [vmem:[%s3 + $0x1c] sm:$0xf]
      %v1344 = vld [vmem:[%s3 + $0x20] sm:$0xf]
      %v1345 = vld [vmem:[%s3 + $0x24] sm:$0xf]
      %v1346 = vld [vmem:[%s3 + $0x28] sm:$0xf]
      %v1347 = vld [vmem:[%s3 + $0x2c] sm:$0xf]
      %v1348 = vld [vmem:[%s3 + $0x30] sm:$0xf]
      %v1349 = vld [vmem:[%s3 + $0x34] sm:$0xf]
      %v1350 = vld [vmem:[%s3 + $0x38] sm:$0xf]
      %v1351 = vld [vmem:[%s3 + $0x3c] sm:$0xf]
      %v1352 = vld [vmem:[%s4] sm:$0x1]
      %v1354 = vperm.slane %v1352, 0
      %v1372 = vunpack.c.l.b16 %v1336
      %v1373 = vunpack.c.l.b16 %v1337
      %v1374 = vunpack.c.l.b16 %v1338
      %v1375 = vunpack.c.l.b16 %v1339
      %v1376 = vunpack.c.l.b16 %v1340
      %v1377 = vunpack.c.l.b16 %v1341
      %v1378 = vunpack.c.l.b16 %v1342
      %v1379 = vunpack.c.l.b16 %v1343
      %v1380 = vunpack.c.l.b16 %v1344
      %v1381 = vunpack.c.l.b16 %v1345
      %v1382 = vunpack.c.l.b16 %v1346
      %v1383 = vunpack.c.l.b16 %v1347
      %v1384 = vunpack.c.l.b16 %v1348
      %v1385 = vunpack.c.l.b16 %v1349
      %v1386 = vunpack.c.l.b16 %v1350
      %v1387 = vunpack.c.l.b16 %v1351
      %v1388 = vpack.c.b16 %v1373, %v1372
      %v1389 = vpack.c.b16 %v1375, %v1374
      %v1390 = vpack.c.b16 %v1377, %v1376
      %v1391 = vpack.c.b16 %v1379, %v1378
      %v1392 = vpack.c.b16 %v1381, %v1380
      %v1393 = vpack.c.b16 %v1383, %v1382
      %v1394 = vpack.c.b16 %v1385, %v1384
      %v1395 = vpack.c.b16 %v1387, %v1386
      %1404 = vmatpush.bf16.msra.mxu0 %v1395
      %1405 = vmatpush.bf16.msra.mxu0 %v1394
      %1406 = vmatpush.bf16.msra.mxu0 %v1393
      %1407 = vmatpush.bf16.msra.mxu0 %v1392
      %1408 = vmatpush.bf16.msra.mxu0 %v1391
      %1409 = vmatpush.bf16.msra.mxu0 %v1390
      %1410 = vmatpush.bf16.msra.mxu0 %v1389
      %1411 = vmatpush.bf16.msra.mxu0 %v1388
      %1412 = vmatmul.bf16.gmra.mxu0 %v1304
      %v1413 = vpop.f32.mrf.mxu0
      %v1414 = vadd.f32 %v1354, %v1413
      %v1415 = vpop.f32.mrf.mxu0
      %v1416 = vadd.f32 %v1354, %v1415
      %1417 = vmatmul.bf16.gmra.mxu0 %v1305
      %v1418 = vpop.f32.mrf.mxu0
      %v1419 = vadd.f32 %v1354, %v1418
      %v1420 = vpop.f32.mrf.mxu0
      %v1421 = vadd.f32 %v1354, %v1420
      %1422 = vmatmul.bf16.gmra.mxu0 %v1306
      %v1423 = vpop.f32.mrf.mxu0
      %v1424 = vadd.f32 %v1354, %v1423
      %v1425 = vpop.f32.mrf.mxu0
      %v1426 = vadd.f32 %v1354, %v1425
      %1427 = vmatmul.bf16.gmra.mxu0 %v1307
      %v1428 = vpop.f32.mrf.mxu0
      %v1429 = vadd.f32 %v1354, %v1428
      %v1430 = vpop.f32.mrf.mxu0
      %v1431 = vadd.f32 %v1354, %v1430
      %1432 = vmatmul.bf16.gmra.mxu0 %v1308
      %v1433 = vpop.f32.mrf.mxu0
      %v1434 = vadd.f32 %v1354, %v1433
      %v1435 = vpop.f32.mrf.mxu0
      %v1436 = vadd.f32 %v1354, %v1435
      %1437 = vmatmul.bf16.gmra.mxu0 %v1309
      %v1438 = vpop.f32.mrf.mxu0
      %v1439 = vadd.f32 %v1354, %v1438
      %v1440 = vpop.f32.mrf.mxu0
      %v1441 = vadd.f32 %v1354, %v1440
      %1442 = vmatmul.bf16.gmra.mxu0 %v1310
      %v1443 = vpop.f32.mrf.mxu0
      %v1444 = vadd.f32 %v1354, %v1443
      %v1445 = vpop.f32.mrf.mxu0
      %v1446 = vadd.f32 %v1354, %v1445
      %1447 = vmatmul.bf16.gmra.mxu0 %v1311
      %v1448 = vpop.f32.mrf.mxu0
      %v1449 = vadd.f32 %v1354, %v1448
      %v1450 = vpop.f32.mrf.mxu0
      %v1451 = vadd.f32 %v1354, %v1450
      %1452 = vmatmul.bf16.gmra.mxu0 %v1312
      %v1453 = vpop.f32.mrf.mxu0
      %v1454 = vadd.f32 %v1354, %v1453
      %v1455 = vpop.f32.mrf.mxu0
      %v1456 = vadd.f32 %v1354, %v1455
      %1457 = vmatmul.bf16.gmra.mxu0 %v1313
      %v1458 = vpop.f32.mrf.mxu0
      %v1459 = vadd.f32 %v1354, %v1458
      %v1460 = vpop.f32.mrf.mxu0
      %v1461 = vadd.f32 %v1354, %v1460
      %1462 = vmatmul.bf16.gmra.mxu0 %v1314
      %v1463 = vpop.f32.mrf.mxu0
      %v1464 = vadd.f32 %v1354, %v1463
      %v1465 = vpop.f32.mrf.mxu0
      %v1466 = vadd.f32 %v1354, %v1465
      %1467 = vmatmul.bf16.gmra.mxu0 %v1315
      %v1468 = vpop.f32.mrf.mxu0
      %v1469 = vadd.f32 %v1354, %v1468
      %v1470 = vpop.f32.mrf.mxu0
      %v1471 = vadd.f32 %v1354, %v1470
      %1472 = vmatmul.bf16.gmra.mxu0 %v1316
      %v1473 = vpop.f32.mrf.mxu0
      %v1474 = vadd.f32 %v1354, %v1473
      %v1475 = vpop.f32.mrf.mxu0
      %v1476 = vadd.f32 %v1354, %v1475
      %1477 = vmatmul.bf16.gmra.mxu0 %v1317
      %v1478 = vpop.f32.mrf.mxu0
      %v1479 = vadd.f32 %v1354, %v1478
      %v1480 = vpop.f32.mrf.mxu0
      %v1481 = vadd.f32 %v1354, %v1480
      %1482 = vmatmul.bf16.gmra.mxu0 %v1318
      %v1483 = vpop.f32.mrf.mxu0
      %v1484 = vadd.f32 %v1354, %v1483
      %v1485 = vpop.f32.mrf.mxu0
      %v1486 = vadd.f32 %v1354, %v1485
      %1487 = vmatmul.bf16.gmra.mxu0 %v1319
      %v1488 = vpop.f32.mrf.mxu0
      %v1489 = vadd.f32 %v1354, %v1488
      %v1490 = vpop.f32.mrf.mxu0
      %v1491 = vadd.f32 %v1354, %v1490
      %1492 = vmatmul.bf16.gmra.mxu0 %v1320
      %v1493 = vpop.f32.mrf.mxu0
      %v1494 = vadd.f32 %v1354, %v1493
      %v1495 = vpop.f32.mrf.mxu0
      %v1496 = vadd.f32 %v1354, %v1495
      %1497 = vmatmul.bf16.gmra.mxu0 %v1321
      %v1498 = vpop.f32.mrf.mxu0
      %v1499 = vadd.f32 %v1354, %v1498
      %v1500 = vpop.f32.mrf.mxu0
      %v1501 = vadd.f32 %v1354, %v1500
      %1502 = vmatmul.bf16.gmra.mxu0 %v1322
      %v1503 = vpop.f32.mrf.mxu0
      %v1504 = vadd.f32 %v1354, %v1503
      %v1505 = vpop.f32.mrf.mxu0
      %v1506 = vadd.f32 %v1354, %v1505
      %1507 = vmatmul.bf16.gmra.mxu0 %v1323
      %v1508 = vpop.f32.mrf.mxu0
      %v1509 = vadd.f32 %v1354, %v1508
      %v1510 = vpop.f32.mrf.mxu0
      %v1511 = vadd.f32 %v1354, %v1510
      %1512 = vmatmul.bf16.gmra.mxu0 %v1324
      %v1513 = vpop.f32.mrf.mxu0
      %v1514 = vadd.f32 %v1354, %v1513
      %v1515 = vpop.f32.mrf.mxu0
      %v1516 = vadd.f32 %v1354, %v1515
      %1517 = vmatmul.bf16.gmra.mxu0 %v1325
      %v1518 = vpop.f32.mrf.mxu0
      %v1519 = vadd.f32 %v1354, %v1518
      %v1520 = vpop.f32.mrf.mxu0
      %v1521 = vadd.f32 %v1354, %v1520
      %1522 = vmatmul.bf16.gmra.mxu0 %v1326
      %v1523 = vpop.f32.mrf.mxu0
      %v1524 = vadd.f32 %v1354, %v1523
      %v1525 = vpop.f32.mrf.mxu0
      %v1526 = vadd.f32 %v1354, %v1525
      %1527 = vmatmul.bf16.gmra.mxu0 %v1327
      %v1528 = vpop.f32.mrf.mxu0
      %v1529 = vadd.f32 %v1354, %v1528
      %v1530 = vpop.f32.mrf.mxu0
      %v1531 = vadd.f32 %v1354, %v1530
      %1532 = vmatmul.bf16.gmra.mxu0 %v1328
      %v1533 = vpop.f32.mrf.mxu0
      %v1534 = vadd.f32 %v1354, %v1533
      %v1535 = vpop.f32.mrf.mxu0
      %v1536 = vadd.f32 %v1354, %v1535
      %1537 = vmatmul.bf16.gmra.mxu0 %v1329
      %v1538 = vpop.f32.mrf.mxu0
      %v1539 = vadd.f32 %v1354, %v1538
      %v1540 = vpop.f32.mrf.mxu0
      %v1541 = vadd.f32 %v1354, %v1540
      %1542 = vmatmul.bf16.gmra.mxu0 %v1330
      %v1543 = vpop.f32.mrf.mxu0
      %v1544 = vadd.f32 %v1354, %v1543
      %v1545 = vpop.f32.mrf.mxu0
      %v1546 = vadd.f32 %v1354, %v1545
      %1547 = vmatmul.bf16.gmra.mxu0 %v1331
      %v1548 = vpop.f32.mrf.mxu0
      %v1549 = vadd.f32 %v1354, %v1548
      %v1550 = vpop.f32.mrf.mxu0
      %v1551 = vadd.f32 %v1354, %v1550
      %1552 = vmatmul.bf16.gmra.mxu0 %v1332
      %v1553 = vpop.f32.mrf.mxu0
      %v1554 = vadd.f32 %v1354, %v1553
      %v1555 = vpop.f32.mrf.mxu0
      %v1556 = vadd.f32 %v1354, %v1555
      %1557 = vmatmul.bf16.gmra.mxu0 %v1333
      %v1558 = vpop.f32.mrf.mxu0
      %v1559 = vadd.f32 %v1354, %v1558
      %v1560 = vpop.f32.mrf.mxu0
      %v1561 = vadd.f32 %v1354, %v1560
      %1562 = vmatmul.bf16.gmra.mxu0 %v1334
      %v1563 = vpop.f32.mrf.mxu0
      %v1564 = vadd.f32 %v1354, %v1563
      %v1565 = vpop.f32.mrf.mxu0
      %v1566 = vadd.f32 %v1354, %v1565
      %1567 = vmatmul.bf16.gmra.mxu0 %v1335
      %v1568 = vpop.f32.mrf.mxu0
      %v1569 = vadd.f32 %v1354, %v1568
      %v1570 = vpop.f32.mrf.mxu0
      %v1571 = vadd.f32 %v1354, %v1570
      %1572 = vdwg.mxu0
      %v1573 = vtanh.pop %v1414
      %v1574 = vtanh.pop %v1416
      %v1575 = vtanh.pop %v1419
      %v1576 = vtanh.pop %v1421
      %v1577 = vtanh.pop %v1424
      %v1578 = vtanh.pop %v1426
      %v1579 = vtanh.pop %v1429
      %v1580 = vtanh.pop %v1431
      %v1581 = vtanh.pop %v1434
      %v1582 = vtanh.pop %v1436
      %v1583 = vtanh.pop %v1439
      %v1584 = vtanh.pop %v1441
      %v1585 = vtanh.pop %v1444
      %v1586 = vtanh.pop %v1446
      %v1587 = vtanh.pop %v1449
      %v1588 = vtanh.pop %v1451
      %v1589 = vtanh.pop %v1454
      %v1590 = vtanh.pop %v1456
      %v1591 = vtanh.pop %v1459
      %v1592 = vtanh.pop %v1461
      %v1593 = vtanh.pop %v1464
      %v1594 = vtanh.pop %v1466
      %v1595 = vtanh.pop %v1469
      %v1596 = vtanh.pop %v1471
      %v1597 = vtanh.pop %v1474
      %v1598 = vtanh.pop %v1476
      %v1599 = vtanh.pop %v1479
      %v1600 = vtanh.pop %v1481
      %v1601 = vtanh.pop %v1484
      %v1602 = vtanh.pop %v1486
      %v1603 = vtanh.pop %v1489
      %v1604 = vtanh.pop %v1491
      %v1605 = vtanh.pop %v1494
      %v1606 = vtanh.pop %v1496
      %v1607 = vtanh.pop %v1499
      %v1608 = vtanh.pop %v1501
      %v1609 = vtanh.pop %v1504
      %v1610 = vtanh.pop %v1506
      %v1611 = vtanh.pop %v1509
      %v1612 = vtanh.pop %v1511
      %v1613 = vtanh.pop %v1514
      %v1614 = vtanh.pop %v1516
      %v1615 = vtanh.pop %v1519
      %v1616 = vtanh.pop %v1521
      %v1617 = vtanh.pop %v1524
      %v1618 = vtanh.pop %v1526
      %v1619 = vtanh.pop %v1529
      %v1620 = vtanh.pop %v1531
      %v1621 = vtanh.pop %v1534
      %v1622 = vtanh.pop %v1536
      %v1623 = vtanh.pop %v1539
      %v1624 = vtanh.pop %v1541
      %v1625 = vtanh.pop %v1544
      %v1626 = vtanh.pop %v1546
      %v1627 = vtanh.pop %v1549
      %v1628 = vtanh.pop %v1551
      %v1629 = vtanh.pop %v1554
      %v1630 = vtanh.pop %v1556
      %v1631 = vtanh.pop %v1559
      %v1632 = vtanh.pop %v1561
      %v1633 = vtanh.pop %v1564
      %v1634 = vtanh.pop %v1566
      %v1635 = vtanh.pop %v1569
      %v1636 = vtanh.pop %v1571
      %v1637 = vpack.c.bf16 %v1574, %v1573
      %v1638 = vpack.c.bf16 %v1576, %v1575
      %v1639 = vpack.c.bf16 %v1578, %v1577
      %v1640 = vpack.c.bf16 %v1580, %v1579
      %v1641 = vpack.c.bf16 %v1582, %v1581
      %v1642 = vpack.c.bf16 %v1584, %v1583
      %v1643 = vpack.c.bf16 %v1586, %v1585
      %v1644 = vpack.c.bf16 %v1588, %v1587
      %v1645 = vpack.c.bf16 %v1590, %v1589
      %v1646 = vpack.c.bf16 %v1592, %v1591
      %v1647 = vpack.c.bf16 %v1594, %v1593
      %v1648 = vpack.c.bf16 %v1596, %v1595
      %v1649 = vpack.c.bf16 %v1598, %v1597
      %v1650 = vpack.c.bf16 %v1600, %v1599
      %v1651 = vpack.c.bf16 %v1602, %v1601
      %v1652 = vpack.c.bf16 %v1604, %v1603
      %v1653 = vpack.c.bf16 %v1606, %v1605
      %v1654 = vpack.c.bf16 %v1608, %v1607
      %v1655 = vpack.c.bf16 %v1610, %v1609
      %v1656 = vpack.c.bf16 %v1612, %v1611
      %v1657 = vpack.c.bf16 %v1614, %v1613
      %v1658 = vpack.c.bf16 %v1616, %v1615
      %v1659 = vpack.c.bf16 %v1618, %v1617
      %v1660 = vpack.c.bf16 %v1620, %v1619
      %v1661 = vpack.c.bf16 %v1622, %v1621
      %v1662 = vpack.c.bf16 %v1624, %v1623
      %v1663 = vpack.c.bf16 %v1626, %v1625
      %v1664 = vpack.c.bf16 %v1628, %v1627
      %v1665 = vpack.c.bf16 %v1630, %v1629
      %v1666 = vpack.c.bf16 %v1632, %v1631
      %v1667 = vpack.c.bf16 %v1634, %v1633
      %v1668 = vpack.c.bf16 %v1636, %v1635
      %v1669 = vld [vmem:[%s5] sm:$0xf]
      %v1670 = vld [vmem:[%s5 + $0x4] sm:$0xf]
      %v1671 = vld [vmem:[%s5 + $0x8] sm:$0xf]
      %v1672 = vld [vmem:[%s5 + $0xc] sm:$0xf]
      %v1673 = vld [vmem:[%s5 + $0x10] sm:$0xf]
      %v1674 = vld [vmem:[%s5 + $0x14] sm:$0xf]
      %v1675 = vld [vmem:[%s5 + $0x18] sm:$0xf]
      %v1676 = vld [vmem:[%s5 + $0x1c] sm:$0xf]
      %v1677 = vld [vmem:[%s5 + $0x20] sm:$0xf]
      %v1678 = vld [vmem:[%s5 + $0x24] sm:$0xf]
      %v1679 = vld [vmem:[%s5 + $0x28] sm:$0xf]
      %v1680 = vld [vmem:[%s5 + $0x2c] sm:$0xf]
      %v1681 = vld [vmem:[%s5 + $0x30] sm:$0xf]
      %v1682 = vld [vmem:[%s5 + $0x34] sm:$0xf]
      %v1683 = vld [vmem:[%s5 + $0x38] sm:$0xf]
      %v1684 = vld [vmem:[%s5 + $0x3c] sm:$0xf]
      %v1685 = vld [vmem:[%s6] sm:$0x1]
      %v1687 = vperm.slane %v1685, 0
      %v1705 = vunpack.c.l.b16 %v1669
      %v1706 = vunpack.c.l.b16 %v1670
      %v1707 = vunpack.c.l.b16 %v1671
      %v1708 = vunpack.c.l.b16 %v1672
      %v1709 = vunpack.c.l.b16 %v1673
      %v1710 = vunpack.c.l.b16 %v1674
      %v1711 = vunpack.c.l.b16 %v1675
      %v1712 = vunpack.c.l.b16 %v1676
      %v1713 = vunpack.c.l.b16 %v1677
      %v1714 = vunpack.c.l.b16 %v1678
      %v1715 = vunpack.c.l.b16 %v1679
      %v1716 = vunpack.c.l.b16 %v1680
      %v1717 = vunpack.c.l.b16 %v1681
      %v1718 = vunpack.c.l.b16 %v1682
      %v1719 = vunpack.c.l.b16 %v1683
      %v1720 = vunpack.c.l.b16 %v1684
      %v1721 = vpack.c.b16 %v1706, %v1705
      %v1722 = vpack.c.b16 %v1708, %v1707
      %v1723 = vpack.c.b16 %v1710, %v1709
      %v1724 = vpack.c.b16 %v1712, %v1711
      %v1725 = vpack.c.b16 %v1714, %v1713
      %v1726 = vpack.c.b16 %v1716, %v1715
      %v1727 = vpack.c.b16 %v1718, %v1717
      %v1728 = vpack.c.b16 %v1720, %v1719
      %1737 = vmatpush.bf16.msra.mxu0 %v1728
      %1738 = vmatpush.bf16.msra.mxu0 %v1727
      %1739 = vmatpush.bf16.msra.mxu0 %v1726
      %1740 = vmatpush.bf16.msra.mxu0 %v1725
      %1741 = vmatpush.bf16.msra.mxu0 %v1724
      %1742 = vmatpush.bf16.msra.mxu0 %v1723
      %1743 = vmatpush.bf16.msra.mxu0 %v1722
      %1744 = vmatpush.bf16.msra.mxu0 %v1721
      %1745 = vmatmul.bf16.gmra.mxu0 %v1637
      %v1746 = vpop.f32.mrf.mxu0
      %v1747 = vadd.f32 %v1687, %v1746
      %v1748 = vpop.f32.mrf.mxu0
      %v1749 = vadd.f32 %v1687, %v1748
      %1750 = vmatmul.bf16.gmra.mxu0 %v1638
      %v1751 = vpop.f32.mrf.mxu0
      %v1752 = vadd.f32 %v1687, %v1751
      %v1753 = vpop.f32.mrf.mxu0
      %v1754 = vadd.f32 %v1687, %v1753
      %1755 = vmatmul.bf16.gmra.mxu0 %v1639
      %v1756 = vpop.f32.mrf.mxu0
      %v1757 = vadd.f32 %v1687, %v1756
      %v1758 = vpop.f32.mrf.mxu0
      %v1759 = vadd.f32 %v1687, %v1758
      %1760 = vmatmul.bf16.gmra.mxu0 %v1640
      %v1761 = vpop.f32.mrf.mxu0
      %v1762 = vadd.f32 %v1687, %v1761
      %v1763 = vpop.f32.mrf.mxu0
      %v1764 = vadd.f32 %v1687, %v1763
      %1765 = vmatmul.bf16.gmra.mxu0 %v1641
      %v1766 = vpop.f32.mrf.mxu0
      %v1767 = vadd.f32 %v1687, %v1766
      %v1768 = vpop.f32.mrf.mxu0
      %v1769 = vadd.f32 %v1687, %v1768
      %1770 = vmatmul.bf16.gmra.mxu0 %v1642
      %v1771 = vpop.f32.mrf.mxu0
      %v1772 = vadd.f32 %v1687, %v1771
      %v1773 = vpop.f32.mrf.mxu0
      %v1774 = vadd.f32 %v1687, %v1773
      %1775 = vmatmul.bf16.gmra.mxu0 %v1643
      %v1776 = vpop.f32.mrf.mxu0
      %v1777 = vadd.f32 %v1687, %v1776
      %v1778 = vpop.f32.mrf.mxu0
      %v1779 = vadd.f32 %v1687, %v1778
      %1780 = vmatmul.bf16.gmra.mxu0 %v1644
      %v1781 = vpop.f32.mrf.mxu0
      %v1782 = vadd.f32 %v1687, %v1781
      %v1783 = vpop.f32.mrf.mxu0
      %v1784 = vadd.f32 %v1687, %v1783
      %1785 = vmatmul.bf16.gmra.mxu0 %v1645
      %v1786 = vpop.f32.mrf.mxu0
      %v1787 = vadd.f32 %v1687, %v1786
      %v1788 = vpop.f32.mrf.mxu0
      %v1789 = vadd.f32 %v1687, %v1788
      %1790 = vmatmul.bf16.gmra.mxu0 %v1646
      %v1791 = vpop.f32.mrf.mxu0
      %v1792 = vadd.f32 %v1687, %v1791
      %v1793 = vpop.f32.mrf.mxu0
      %v1794 = vadd.f32 %v1687, %v1793
      %1795 = vmatmul.bf16.gmra.mxu0 %v1647
      %v1796 = vpop.f32.mrf.mxu0
      %v1797 = vadd.f32 %v1687, %v1796
      %v1798 = vpop.f32.mrf.mxu0
      %v1799 = vadd.f32 %v1687, %v1798
      %1800 = vmatmul.bf16.gmra.mxu0 %v1648
      %v1801 = vpop.f32.mrf.mxu0
      %v1802 = vadd.f32 %v1687, %v1801
      %v1803 = vpop.f32.mrf.mxu0
      %v1804 = vadd.f32 %v1687, %v1803
      %1805 = vmatmul.bf16.gmra.mxu0 %v1649
      %v1806 = vpop.f32.mrf.mxu0
      %v1807 = vadd.f32 %v1687, %v1806
      %v1808 = vpop.f32.mrf.mxu0
      %v1809 = vadd.f32 %v1687, %v1808
      %1810 = vmatmul.bf16.gmra.mxu0 %v1650
      %v1811 = vpop.f32.mrf.mxu0
      %v1812 = vadd.f32 %v1687, %v1811
      %v1813 = vpop.f32.mrf.mxu0
      %v1814 = vadd.f32 %v1687, %v1813
      %1815 = vmatmul.bf16.gmra.mxu0 %v1651
      %v1816 = vpop.f32.mrf.mxu0
      %v1817 = vadd.f32 %v1687, %v1816
      %v1818 = vpop.f32.mrf.mxu0
      %v1819 = vadd.f32 %v1687, %v1818
      %1820 = vmatmul.bf16.gmra.mxu0 %v1652
      %v1821 = vpop.f32.mrf.mxu0
      %v1822 = vadd.f32 %v1687, %v1821
      %v1823 = vpop.f32.mrf.mxu0
      %v1824 = vadd.f32 %v1687, %v1823
      %1825 = vmatmul.bf16.gmra.mxu0 %v1653
      %v1826 = vpop.f32.mrf.mxu0
      %v1827 = vadd.f32 %v1687, %v1826
      %v1828 = vpop.f32.mrf.mxu0
      %v1829 = vadd.f32 %v1687, %v1828
      %1830 = vmatmul.bf16.gmra.mxu0 %v1654
      %v1831 = vpop.f32.mrf.mxu0
      %v1832 = vadd.f32 %v1687, %v1831
      %v1833 = vpop.f32.mrf.mxu0
      %v1834 = vadd.f32 %v1687, %v1833
      %1835 = vmatmul.bf16.gmra.mxu0 %v1655
      %v1836 = vpop.f32.mrf.mxu0
      %v1837 = vadd.f32 %v1687, %v1836
      %v1838 = vpop.f32.mrf.mxu0
      %v1839 = vadd.f32 %v1687, %v1838
      %1840 = vmatmul.bf16.gmra.mxu0 %v1656
      %v1841 = vpop.f32.mrf.mxu0
      %v1842 = vadd.f32 %v1687, %v1841
      %v1843 = vpop.f32.mrf.mxu0
      %v1844 = vadd.f32 %v1687, %v1843
      %1845 = vmatmul.bf16.gmra.mxu0 %v1657
      %v1846 = vpop.f32.mrf.mxu0
      %v1847 = vadd.f32 %v1687, %v1846
      %v1848 = vpop.f32.mrf.mxu0
      %v1849 = vadd.f32 %v1687, %v1848
      %1850 = vmatmul.bf16.gmra.mxu0 %v1658
      %v1851 = vpop.f32.mrf.mxu0
      %v1852 = vadd.f32 %v1687, %v1851
      %v1853 = vpop.f32.mrf.mxu0
      %v1854 = vadd.f32 %v1687, %v1853
      %1855 = vmatmul.bf16.gmra.mxu0 %v1659
      %v1856 = vpop.f32.mrf.mxu0
      %v1857 = vadd.f32 %v1687, %v1856
      %v1858 = vpop.f32.mrf.mxu0
      %v1859 = vadd.f32 %v1687, %v1858
      %1860 = vmatmul.bf16.gmra.mxu0 %v1660
      %v1861 = vpop.f32.mrf.mxu0
      %v1862 = vadd.f32 %v1687, %v1861
      %v1863 = vpop.f32.mrf.mxu0
      %v1864 = vadd.f32 %v1687, %v1863
      %1865 = vmatmul.bf16.gmra.mxu0 %v1661
      %v1866 = vpop.f32.mrf.mxu0
      %v1867 = vadd.f32 %v1687, %v1866
      %v1868 = vpop.f32.mrf.mxu0
      %v1869 = vadd.f32 %v1687, %v1868
      %1870 = vmatmul.bf16.gmra.mxu0 %v1662
      %v1871 = vpop.f32.mrf.mxu0
      %v1872 = vadd.f32 %v1687, %v1871
      %v1873 = vpop.f32.mrf.mxu0
      %v1874 = vadd.f32 %v1687, %v1873
      %1875 = vmatmul.bf16.gmra.mxu0 %v1663
      %v1876 = vpop.f32.mrf.mxu0
      %v1877 = vadd.f32 %v1687, %v1876
      %v1878 = vpop.f32.mrf.mxu0
      %v1879 = vadd.f32 %v1687, %v1878
      %1880 = vmatmul.bf16.gmra.mxu0 %v1664
      %v1881 = vpop.f32.mrf.mxu0
      %v1882 = vadd.f32 %v1687, %v1881
      %v1883 = vpop.f32.mrf.mxu0
      %v1884 = vadd.f32 %v1687, %v1883
      %1885 = vmatmul.bf16.gmra.mxu0 %v1665
      %v1886 = vpop.f32.mrf.mxu0
      %v1887 = vadd.f32 %v1687, %v1886
      %v1888 = vpop.f32.mrf.mxu0
      %v1889 = vadd.f32 %v1687, %v1888
      %1890 = vmatmul.bf16.gmra.mxu0 %v1666
      %v1891 = vpop.f32.mrf.mxu0
      %v1892 = vadd.f32 %v1687, %v1891
      %v1893 = vpop.f32.mrf.mxu0
      %v1894 = vadd.f32 %v1687, %v1893
      %1895 = vmatmul.bf16.gmra.mxu0 %v1667
      %v1896 = vpop.f32.mrf.mxu0
      %v1897 = vadd.f32 %v1687, %v1896
      %v1898 = vpop.f32.mrf.mxu0
      %v1899 = vadd.f32 %v1687, %v1898
      %1900 = vmatmul.bf16.gmra.mxu0 %v1668
      %v1901 = vpop.f32.mrf.mxu0
      %v1902 = vadd.f32 %v1687, %v1901
      %v1903 = vpop.f32.mrf.mxu0
      %v1904 = vadd.f32 %v1687, %v1903
      %1905 = vdwg.mxu0
      %v1906 = vtanh.pop %v1747
      %v1907 = vtanh.pop %v1749
      %v1908 = vtanh.pop %v1752
      %v1909 = vtanh.pop %v1754
      %v1910 = vtanh.pop %v1757
      %v1911 = vtanh.pop %v1759
      %v1912 = vtanh.pop %v1762
      %v1913 = vtanh.pop %v1764
      %v1914 = vtanh.pop %v1767
      %v1915 = vtanh.pop %v1769
      %v1916 = vtanh.pop %v1772
      %v1917 = vtanh.pop %v1774
      %v1918 = vtanh.pop %v1777
      %v1919 = vtanh.pop %v1779
      %v1920 = vtanh.pop %v1782
      %v1921 = vtanh.pop %v1784
      %v1922 = vtanh.pop %v1787
      %v1923 = vtanh.pop %v1789
      %v1924 = vtanh.pop %v1792
      %v1925 = vtanh.pop %v1794
      %v1926 = vtanh.pop %v1797
      %v1927 = vtanh.pop %v1799
      %v1928 = vtanh.pop %v1802
      %v1929 = vtanh.pop %v1804
      %v1930 = vtanh.pop %v1807
      %v1931 = vtanh.pop %v1809
      %v1932 = vtanh.pop %v1812
      %v1933 = vtanh.pop %v1814
      %v1934 = vtanh.pop %v1817
      %v1935 = vtanh.pop %v1819
      %v1936 = vtanh.pop %v1822
      %v1937 = vtanh.pop %v1824
      %v1938 = vtanh.pop %v1827
      %v1939 = vtanh.pop %v1829
      %v1940 = vtanh.pop %v1832
      %v1941 = vtanh.pop %v1834
      %v1942 = vtanh.pop %v1837
      %v1943 = vtanh.pop %v1839
      %v1944 = vtanh.pop %v1842
      %v1945 = vtanh.pop %v1844
      %v1946 = vtanh.pop %v1847
      %v1947 = vtanh.pop %v1849
      %v1948 = vtanh.pop %v1852
      %v1949 = vtanh.pop %v1854
      %v1950 = vtanh.pop %v1857
      %v1951 = vtanh.pop %v1859
      %v1952 = vtanh.pop %v1862
      %v1953 = vtanh.pop %v1864
      %v1954 = vtanh.pop %v1867
      %v1955 = vtanh.pop %v1869
      %v1956 = vtanh.pop %v1872
      %v1957 = vtanh.pop %v1874
      %v1958 = vtanh.pop %v1877
      %v1959 = vtanh.pop %v1879
      %v1960 = vtanh.pop %v1882
      %v1961 = vtanh.pop %v1884
      %v1962 = vtanh.pop %v1887
      %v1963 = vtanh.pop %v1889
      %v1964 = vtanh.pop %v1892
      %v1965 = vtanh.pop %v1894
      %v1966 = vtanh.pop %v1897
      %v1967 = vtanh.pop %v1899
      %v1968 = vtanh.pop %v1902
      %v1969 = vtanh.pop %v1904
      %v1970 = vld [vmem:[%s7] sm:$0xff]
      %v1971 = vld [vmem:[%s7 + $0x8] sm:$0xff]
      %v1972 = vld [vmem:[%s7 + $0x10] sm:$0xff]
      %v1973 = vld [vmem:[%s7 + $0x18] sm:$0xff]
      %v1974 = vld [vmem:[%s7 + $0x20] sm:$0xff]
      %v1975 = vld [vmem:[%s7 + $0x28] sm:$0xff]
      %v1976 = vld [vmem:[%s7 + $0x30] sm:$0xff]
      %v1977 = vld [vmem:[%s7 + $0x38] sm:$0xff]
      %v1978 = vld [vmem:[%s7 + $0x40] sm:$0xff]
      %v1979 = vld [vmem:[%s7 + $0x48] sm:$0xff]
      %v1980 = vld [vmem:[%s7 + $0x50] sm:$0xff]
      %v1981 = vld [vmem:[%s7 + $0x58] sm:$0xff]
      %v1982 = vld [vmem:[%s7 + $0x60] sm:$0xff]
      %v1983 = vld [vmem:[%s7 + $0x68] sm:$0xff]
      %v1984 = vld [vmem:[%s7 + $0x70] sm:$0xff]
      %v1985 = vld [vmem:[%s7 + $0x78] sm:$0xff]
      %v1986 = vld [vmem:[%s8] sm:$0x1]
      %v1988 = vperm.slane %v1986, 0
      %1990 = vmatpush.msra.mxu0 %v1985
      %1991 = vmatpush.msra.mxu0 %v1984
      %1992 = vmatpush.msra.mxu0 %v1983
      %1993 = vmatpush.msra.mxu0 %v1982
      %1994 = vmatpush.msra.mxu0 %v1981
      %1995 = vmatpush.msra.mxu0 %v1980
      %1996 = vmatpush.msra.mxu0 %v1979
      %1997 = vmatpush.msra.mxu0 %v1978
      %1998 = vmatpush.msra.mxu0 %v1977
      %1999 = vmatpush.msra.mxu0 %v1976
      %2000 = vmatpush.msra.mxu0 %v1975
      %2001 = vmatpush.msra.mxu0 %v1974
      %2002 = vmatpush.msra.mxu0 %v1973
      %2003 = vmatpush.msra.mxu0 %v1972
      %2004 = vmatpush.msra.mxu0 %v1971
      %2005 = vmatpush.msra.mxu0 %v1970
      %2006 = vmatmul.f32.gmra.mxu0 %v1906
      %v2007 = vpop.f32.mrf.mxu0
      %v2008 = vadd.f32 %v1988, %v2007
      %2009 = vmatmul.f32.gmra.mxu0 %v1907
      %v2010 = vpop.f32.mrf.mxu0
      %v2011 = vadd.f32 %v1988, %v2010
      %2012 = vmatmul.f32.gmra.mxu0 %v1908
      %v2013 = vpop.f32.mrf.mxu0
      %v2014 = vadd.f32 %v1988, %v2013
      %2015 = vmatmul.f32.gmra.mxu0 %v1909
      %v2016 = vpop.f32.mrf.mxu0
      %v2017 = vadd.f32 %v1988, %v2016
      %2018 = vmatmul.f32.gmra.mxu0 %v1910
      %v2019 = vpop.f32.mrf.mxu0
      %v2020 = vadd.f32 %v1988, %v2019
      %2021 = vmatmul.f32.gmra.mxu0 %v1911
      %v2022 = vpop.f32.mrf.mxu0
      %v2023 = vadd.f32 %v1988, %v2022
      %2024 = vmatmul.f32.gmra.mxu0 %v1912
      %v2025 = vpop.f32.mrf.mxu0
      %v2026 = vadd.f32 %v1988, %v2025
      %2027 = vmatmul.f32.gmra.mxu0 %v1913
      %v2028 = vpop.f32.mrf.mxu0
      %v2029 = vadd.f32 %v1988, %v2028
      %2030 = vmatmul.f32.gmra.mxu0 %v1914
      %v2031 = vpop.f32.mrf.mxu0
      %v2032 = vadd.f32 %v1988, %v2031
      %2033 = vmatmul.f32.gmra.mxu0 %v1915
      %v2034 = vpop.f32.mrf.mxu0
      %v2035 = vadd.f32 %v1988, %v2034
      %2036 = vmatmul.f32.gmra.mxu0 %v1916
      %v2037 = vpop.f32.mrf.mxu0
      %v2038 = vadd.f32 %v1988, %v2037
      %2039 = vmatmul.f32.gmra.mxu0 %v1917
      %v2040 = vpop.f32.mrf.mxu0
      %v2041 = vadd.f32 %v1988, %v2040
      %2042 = vmatmul.f32.gmra.mxu0 %v1918
      %v2043 = vpop.f32.mrf.mxu0
      %v2044 = vadd.f32 %v1988, %v2043
      %2045 = vmatmul.f32.gmra.mxu0 %v1919
      %v2046 = vpop.f32.mrf.mxu0
      %v2047 = vadd.f32 %v1988, %v2046
      %2048 = vmatmul.f32.gmra.mxu0 %v1920
      %v2049 = vpop.f32.mrf.mxu0
      %v2050 = vadd.f32 %v1988, %v2049
      %2051 = vmatmul.f32.gmra.mxu0 %v1921
      %v2052 = vpop.f32.mrf.mxu0
      %v2053 = vadd.f32 %v1988, %v2052
      %2054 = vmatmul.f32.gmra.mxu0 %v1922
      %v2055 = vpop.f32.mrf.mxu0
      %v2056 = vadd.f32 %v1988, %v2055
      %2057 = vmatmul.f32.gmra.mxu0 %v1923
      %v2058 = vpop.f32.mrf.mxu0
      %v2059 = vadd.f32 %v1988, %v2058
      %2060 = vmatmul.f32.gmra.mxu0 %v1924
      %v2061 = vpop.f32.mrf.mxu0
      %v2062 = vadd.f32 %v1988, %v2061
      %2063 = vmatmul.f32.gmra.mxu0 %v1925
      %v2064 = vpop.f32.mrf.mxu0
      %v2065 = vadd.f32 %v1988, %v2064
      %2066 = vmatmul.f32.gmra.mxu0 %v1926
      %v2067 = vpop.f32.mrf.mxu0
      %v2068 = vadd.f32 %v1988, %v2067
      %2069 = vmatmul.f32.gmra.mxu0 %v1927
      %v2070 = vpop.f32.mrf.mxu0
      %v2071 = vadd.f32 %v1988, %v2070
      %2072 = vmatmul.f32.gmra.mxu0 %v1928
      %v2073 = vpop.f32.mrf.mxu0
      %v2074 = vadd.f32 %v1988, %v2073
      %2075 = vmatmul.f32.gmra.mxu0 %v1929
      %v2076 = vpop.f32.mrf.mxu0
      %v2077 = vadd.f32 %v1988, %v2076
      %2078 = vmatmul.f32.gmra.mxu0 %v1930
      %v2079 = vpop.f32.mrf.mxu0
      %v2080 = vadd.f32 %v1988, %v2079
      %2081 = vmatmul.f32.gmra.mxu0 %v1931
      %v2082 = vpop.f32.mrf.mxu0
      %v2083 = vadd.f32 %v1988, %v2082
      %2084 = vmatmul.f32.gmra.mxu0 %v1932
      %v2085 = vpop.f32.mrf.mxu0
      %v2086 = vadd.f32 %v1988, %v2085
      %2087 = vmatmul.f32.gmra.mxu0 %v1933
      %v2088 = vpop.f32.mrf.mxu0
      %v2089 = vadd.f32 %v1988, %v2088
      %2090 = vmatmul.f32.gmra.mxu0 %v1934
      %v2091 = vpop.f32.mrf.mxu0
      %v2092 = vadd.f32 %v1988, %v2091
      %2093 = vmatmul.f32.gmra.mxu0 %v1935
      %v2094 = vpop.f32.mrf.mxu0
      %v2095 = vadd.f32 %v1988, %v2094
      %2096 = vmatmul.f32.gmra.mxu0 %v1936
      %v2097 = vpop.f32.mrf.mxu0
      %v2098 = vadd.f32 %v1988, %v2097
      %2099 = vmatmul.f32.gmra.mxu0 %v1937
      %v2100 = vpop.f32.mrf.mxu0
      %v2101 = vadd.f32 %v1988, %v2100
      %2102 = vmatmul.f32.gmra.mxu0 %v1938
      %v2103 = vpop.f32.mrf.mxu0
      %v2104 = vadd.f32 %v1988, %v2103
      %2105 = vmatmul.f32.gmra.mxu0 %v1939
      %v2106 = vpop.f32.mrf.mxu0
      %v2107 = vadd.f32 %v1988, %v2106
      %2108 = vmatmul.f32.gmra.mxu0 %v1940
      %v2109 = vpop.f32.mrf.mxu0
      %v2110 = vadd.f32 %v1988, %v2109
      %2111 = vmatmul.f32.gmra.mxu0 %v1941
      %v2112 = vpop.f32.mrf.mxu0
      %v2113 = vadd.f32 %v1988, %v2112
      %2114 = vmatmul.f32.gmra.mxu0 %v1942
      %v2115 = vpop.f32.mrf.mxu0
      %v2116 = vadd.f32 %v1988, %v2115
      %2117 = vmatmul.f32.gmra.mxu0 %v1943
      %v2118 = vpop.f32.mrf.mxu0
      %v2119 = vadd.f32 %v1988, %v2118
      %2120 = vmatmul.f32.gmra.mxu0 %v1944
      %v2121 = vpop.f32.mrf.mxu0
      %v2122 = vadd.f32 %v1988, %v2121
      %2123 = vmatmul.f32.gmra.mxu0 %v1945
      %v2124 = vpop.f32.mrf.mxu0
      %v2125 = vadd.f32 %v1988, %v2124
      %2126 = vmatmul.f32.gmra.mxu0 %v1946
      %v2127 = vpop.f32.mrf.mxu0
      %v2128 = vadd.f32 %v1988, %v2127
      %2129 = vmatmul.f32.gmra.mxu0 %v1947
      %v2130 = vpop.f32.mrf.mxu0
      %v2131 = vadd.f32 %v1988, %v2130
      %2132 = vmatmul.f32.gmra.mxu0 %v1948
      %v2133 = vpop.f32.mrf.mxu0
      %v2134 = vadd.f32 %v1988, %v2133
      %2135 = vmatmul.f32.gmra.mxu0 %v1949
      %v2136 = vpop.f32.mrf.mxu0
      %v2137 = vadd.f32 %v1988, %v2136
      %2138 = vmatmul.f32.gmra.mxu0 %v1950
      %v2139 = vpop.f32.mrf.mxu0
      %v2140 = vadd.f32 %v1988, %v2139
      %2141 = vmatmul.f32.gmra.mxu0 %v1951
      %v2142 = vpop.f32.mrf.mxu0
      %v2143 = vadd.f32 %v1988, %v2142
      %2144 = vmatmul.f32.gmra.mxu0 %v1952
      %v2145 = vpop.f32.mrf.mxu0
      %v2146 = vadd.f32 %v1988, %v2145
      %2147 = vmatmul.f32.gmra.mxu0 %v1953
      %v2148 = vpop.f32.mrf.mxu0
      %v2149 = vadd.f32 %v1988, %v2148
      %2150 = vmatmul.f32.gmra.mxu0 %v1954
      %v2151 = vpop.f32.mrf.mxu0
      %v2152 = vadd.f32 %v1988, %v2151
      %2153 = vmatmul.f32.gmra.mxu0 %v1955
      %v2154 = vpop.f32.mrf.mxu0
      %v2155 = vadd.f32 %v1988, %v2154
      %2156 = vmatmul.f32.gmra.mxu0 %v1956
      %v2157 = vpop.f32.mrf.mxu0
      %v2158 = vadd.f32 %v1988, %v2157
      %2159 = vmatmul.f32.gmra.mxu0 %v1957
      %v2160 = vpop.f32.mrf.mxu0
      %v2161 = vadd.f32 %v1988, %v2160
      %2162 = vmatmul.f32.gmra.mxu0 %v1958
      %v2163 = vpop.f32.mrf.mxu0
      %v2164 = vadd.f32 %v1988, %v2163
      %2165 = vmatmul.f32.gmra.mxu0 %v1959
      %v2166 = vpop.f32.mrf.mxu0
      %v2167 = vadd.f32 %v1988, %v2166
      %2168 = vmatmul.f32.gmra.mxu0 %v1960
      %v2169 = vpop.f32.mrf.mxu0
      %v2170 = vadd.f32 %v1988, %v2169
      %2171 = vmatmul.f32.gmra.mxu0 %v1961
      %v2172 = vpop.f32.mrf.mxu0
      %v2173 = vadd.f32 %v1988, %v2172
      %2174 = vmatmul.f32.gmra.mxu0 %v1962
      %v2175 = vpop.f32.mrf.mxu0
      %v2176 = vadd.f32 %v1988, %v2175
      %2177 = vmatmul.f32.gmra.mxu0 %v1963
      %v2178 = vpop.f32.mrf.mxu0
      %v2179 = vadd.f32 %v1988, %v2178
      %2180 = vmatmul.f32.gmra.mxu0 %v1964
      %v2181 = vpop.f32.mrf.mxu0
      %v2182 = vadd.f32 %v1988, %v2181
      %2183 = vmatmul.f32.gmra.mxu0 %v1965
      %v2184 = vpop.f32.mrf.mxu0
      %v2185 = vadd.f32 %v1988, %v2184
      %2186 = vmatmul.f32.gmra.mxu0 %v1966
      %v2187 = vpop.f32.mrf.mxu0
      %v2188 = vadd.f32 %v1988, %v2187
      %2189 = vmatmul.f32.gmra.mxu0 %v1967
      %v2190 = vpop.f32.mrf.mxu0
      %v2191 = vadd.f32 %v1988, %v2190
      %2192 = vmatmul.f32.gmra.mxu0 %v1968
      %v2193 = vpop.f32.mrf.mxu0
      %v2194 = vadd.f32 %v1988, %v2193
      %2195 = vmatmul.f32.gmra.mxu0 %v1969
      %v2196 = vpop.f32.mrf.mxu0
      %v2197 = vadd.f32 %v1988, %v2196
      %2198 = vdwg.mxu0
      %vm2199 = vcmask 15360
      %2200 = vst.msk [vmem:[%s334] sm:$0xff] %vm2199, %v2008
      %2201 = vst.msk [vmem:[%s334 + $0x8] sm:$0xff] %vm2199, %v2011
      %2202 = vst.msk [vmem:[%s334 + $0x10] sm:$0xff] %vm2199, %v2014
      %2203 = vst.msk [vmem:[%s334 + $0x18] sm:$0xff] %vm2199, %v2017
      %2204 = vst.msk [vmem:[%s334 + $0x20] sm:$0xff] %vm2199, %v2020
      %2205 = vst.msk [vmem:[%s334 + $0x28] sm:$0xff] %vm2199, %v2023
      %2206 = vst.msk [vmem:[%s334 + $0x30] sm:$0xff] %vm2199, %v2026
      %2207 = vst.msk [vmem:[%s334 + $0x38] sm:$0xff] %vm2199, %v2029
      %2208 = vst.msk [vmem:[%s334 + $0x40] sm:$0xff] %vm2199, %v2032
      %2209 = vst.msk [vmem:[%s334 + $0x48] sm:$0xff] %vm2199, %v2035
      %2210 = vst.msk [vmem:[%s334 + $0x50] sm:$0xff] %vm2199, %v2038
      %2211 = vst.msk [vmem:[%s334 + $0x58] sm:$0xff] %vm2199, %v2041
      %2212 = vst.msk [vmem:[%s334 + $0x60] sm:$0xff] %vm2199, %v2044
      %2213 = vst.msk [vmem:[%s334 + $0x68] sm:$0xff] %vm2199, %v2047
      %2214 = vst.msk [vmem:[%s334 + $0x70] sm:$0xff] %vm2199, %v2050
      %2215 = vst.msk [vmem:[%s334 + $0x78] sm:$0xff] %vm2199, %v2053
      %2216 = vst.msk [vmem:[%s334 + $0x80] sm:$0xff] %vm2199, %v2056
      %2217 = vst.msk [vmem:[%s334 + $0x88] sm:$0xff] %vm2199, %v2059
      %2218 = vst.msk [vmem:[%s334 + $0x90] sm:$0xff] %vm2199, %v2062
      %2219 = vst.msk [vmem:[%s334 + $0x98] sm:$0xff] %vm2199, %v2065
      %2220 = vst.msk [vmem:[%s334 + $0xa0] sm:$0xff] %vm2199, %v2068
      %2221 = vst.msk [vmem:[%s334 + $0xa8] sm:$0xff] %vm2199, %v2071
      %2222 = vst.msk [vmem:[%s334 + $0xb0] sm:$0xff] %vm2199, %v2074
      %2223 = vst.msk [vmem:[%s334 + $0xb8] sm:$0xff] %vm2199, %v2077
      %2224 = vst.msk [vmem:[%s334 + $0xc0] sm:$0xff] %vm2199, %v2080
      %2225 = vst.msk [vmem:[%s334 + $0xc8] sm:$0xff] %vm2199, %v2083
      %2226 = vst.msk [vmem:[%s334 + $0xd0] sm:$0xff] %vm2199, %v2086
      %2227 = vst.msk [vmem:[%s334 + $0xd8] sm:$0xff] %vm2199, %v2089
      %2228 = vst.msk [vmem:[%s334 + $0xe0] sm:$0xff] %vm2199, %v2092
      %2229 = vst.msk [vmem:[%s334 + $0xe8] sm:$0xff] %vm2199, %v2095
      %2230 = vst.msk [vmem:[%s334 + $0xf0] sm:$0xff] %vm2199, %v2098
      %2231 = vst.msk [vmem:[%s334 + $0xf8] sm:$0xff] %vm2199, %v2101
      %2232 = vst.msk [vmem:[%s334 + $0x100] sm:$0xff] %vm2199, %v2104
      %2233 = vst.msk [vmem:[%s334 + $0x108] sm:$0xff] %vm2199, %v2107
      %2234 = vst.msk [vmem:[%s334 + $0x110] sm:$0xff] %vm2199, %v2110
      %2235 = vst.msk [vmem:[%s334 + $0x118] sm:$0xff] %vm2199, %v2113
      %2236 = vst.msk [vmem:[%s334 + $0x120] sm:$0xff] %vm2199, %v2116
      %2237 = vst.msk [vmem:[%s334 + $0x128] sm:$0xff] %vm2199, %v2119
      %2238 = vst.msk [vmem:[%s334 + $0x130] sm:$0xff] %vm2199, %v2122
      %2239 = vst.msk [vmem:[%s334 + $0x138] sm:$0xff] %vm2199, %v2125
      %2240 = vst.msk [vmem:[%s334 + $0x140] sm:$0xff] %vm2199, %v2128
      %2241 = vst.msk [vmem:[%s334 + $0x148] sm:$0xff] %vm2199, %v2131
      %2242 = vst.msk [vmem:[%s334 + $0x150] sm:$0xff] %vm2199, %v2134
      %2243 = vst.msk [vmem:[%s334 + $0x158] sm:$0xff] %vm2199, %v2137
      %2244 = vst.msk [vmem:[%s334 + $0x160] sm:$0xff] %vm2199, %v2140
      %2245 = vst.msk [vmem:[%s334 + $0x168] sm:$0xff] %vm2199, %v2143
      %2246 = vst.msk [vmem:[%s334 + $0x170] sm:$0xff] %vm2199, %v2146
      %2247 = vst.msk [vmem:[%s334 + $0x178] sm:$0xff] %vm2199, %v2149
      %2248 = vst.msk [vmem:[%s334 + $0x180] sm:$0xff] %vm2199, %v2152
      %2249 = vst.msk [vmem:[%s334 + $0x188] sm:$0xff] %vm2199, %v2155
      %2250 = vst.msk [vmem:[%s334 + $0x190] sm:$0xff] %vm2199, %v2158
      %2251 = vst.msk [vmem:[%s334 + $0x198] sm:$0xff] %vm2199, %v2161
      %2252 = vst.msk [vmem:[%s334 + $0x1a0] sm:$0xff] %vm2199, %v2164
      %2253 = vst.msk [vmem:[%s334 + $0x1a8] sm:$0xff] %vm2199, %v2167
      %2254 = vst.msk [vmem:[%s334 + $0x1b0] sm:$0xff] %vm2199, %v2170
      %2255 = vst.msk [vmem:[%s334 + $0x1b8] sm:$0xff] %vm2199, %v2173
      %2256 = vst.msk [vmem:[%s334 + $0x1c0] sm:$0xff] %vm2199, %v2176
      %2257 = vst.msk [vmem:[%s334 + $0x1c8] sm:$0xff] %vm2199, %v2179
      %2258 = vst.msk [vmem:[%s334 + $0x1d0] sm:$0xff] %vm2199, %v2182
      %2259 = vst.msk [vmem:[%s334 + $0x1d8] sm:$0xff] %vm2199, %v2185
      %2260 = vst.msk [vmem:[%s334 + $0x1e0] sm:$0xff] %vm2199, %v2188
      %2261 = vst.msk [vmem:[%s334 + $0x1e8] sm:$0xff] %vm2199, %v2191
      %2262 = vst.msk [vmem:[%s334 + $0x1f0] sm:$0xff] %vm2199, %v2194
      %2263 = vst.msk [vmem:[%s334 + $0x1f8] sm:$0xff] %vm2199, %v2197
      %s2264 = smul.u32 64, %s20
      %p2265 = scmp.lt.s32.totalorder %s2264, 127
      %s2266 = scalar_select %p2265, %s2264, 127
      %s2267 = smul.addr %s2266, 8
      %s2268 = scalar_lea.vmem %s9, %s2267
      // Predicated region
      $region57: #{pinn_forward.1} parent=55 // pred_check
        %p2269 = pneg %p232
      $region58: #{pinn_forward.1} parent=55 // pred_check_branch
        %2271 = sbr.rel (%p2269) target = $region60
      $region59: #{pinn_forward.1} parent=55 // pred_region
        %s2272 = smul.u32 64, %s20
      $region60: #{pinn_forward.1} parent=55 // pred_fallthru
        _
    $region56: #{pinn_forward.1} parent=5 // pred_fallthru
      _
    %p2273 = scmp.le.s32.totalorder 2, %s15
    // Predicated region
    $region61: #{pinn_forward.1} parent=5 // pred_check
      %p2274 = pneg %p2273
    $region62: #{pinn_forward.1} parent=5 // pred_check_branch
      %2276 = sbr.rel (%p2274) target = $region64
    $region63: #{pinn_forward.1} parent=5 // pred_region
      %s2277 = ssub.s32 %s15, 2
      // Predicated region
      $region65: #{pinn_forward.1} parent=63 // pred_check
        %p2278 = pneg %p238
      $region66: #{pinn_forward.1} parent=63 // pred_check_branch
        %2280 = sbr.rel (%p2278) target = $region68
      $region67: #{pinn_forward.1} parent=63 // pred_region
        %s2281 = smul.u32 64, %s21
        %p2282 = scmp.lt.s32.totalorder %s2281, 127
        %s2283 = scalar_select %p2282, %s2281, 127
        %s2284 = smul.addr %s2283, 8
        %s2285 = scalar_lea.vmem %s9, %s2284
      $region68: #{pinn_forward.1} parent=63 // pred_fallthru
        _
    $region64: #{pinn_forward.1} parent=5 // pred_fallthru
      _
  $region6: #{pinn_forward.1} parent=0 // loop_footer
    %s19 = sadd.s32 1, %s15
  $region7: #{pinn_forward.1} parent=0 // loop_footer_branch
    %14 = sbr.rel target = $region3
  $region8: #{pinn_forward.1} parent=0 // loop_exit
    _

</llo_original>
